<compile_context>
chip_gen: v7x
topology: tpu7x:2x2x1
jax: 0.10.0
libtpu: 0.0.40
codegen_flags: <defaults>
</compile_context>

<pallas_src>
import math
import functools

import jax
import jax.numpy as jnp
from jax import lax
from jax.experimental import pallas as pl
from jax.experimental.pallas import tpu as pltpu

# Full-precision f32 matmuls in the pure-JAX reference so the bf16 kernel can be
# compared against an accurate baseline. In-kernel matmuls pass their precision
# explicitly, so this does not affect the kernel.
jax.config.update("jax_default_matmul_precision", "highest")

_MM_PREC = lax.Precision.DEFAULT  # bf16 operands -> native bf16 MXU, f32 accumulate


def _layer_norm(x, alpha, bias, eps, d):
    # Matches the spec's LayerNormalization: alpha * (x - mean) / (std + eps) + bias,
    # with torch's default unbiased std (ddof = 1). Computed in f32.
    mean = jnp.mean(x, axis=-1, keepdims=True)
    diff = x - mean
    var = jnp.sum(diff * diff, axis=-1, keepdims=True) / (d - 1)
    std = jnp.sqrt(var)
    return alpha * diff / (std + eps) + bias


def _encoder_block_kernel(
    x_ref, mask_ref,
    wqkv_ref, bqkv_ref, wo_ref, bo_ref,
    w1_ref, b1_ref, w2_ref, b2_ref, ln_ref,
    out_ref,
    *, num_heads, d_k, eps, ffn_chunk,
):
    S = x_ref.shape[1]
    D = x_ref.shape[2]
    d_ff = w1_ref.shape[1]

    x = x_ref[0]                                              # (S, D) f32 residual stream
    # masked_fill(mask == 0, -1e9): build the boolean once (hoisted out of the heads).
    mask_is_zero = mask_ref[0, 0].astype(jnp.float32) == 0.0  # (S, S) bool

    # ---- residual connection 0: pre-norm + multi-head self-attention ----
    xn = _layer_norm(x, ln_ref[0], ln_ref[1], eps, D).astype(jnp.bfloat16)

    # Fused lane-dense QKV projection: (S, D) @ (D, 3D) -> (S, 3D) f32.
    # The 1/sqrt(d_k) scale is pre-folded into the Q columns/bias by the wrapper.
    qkv = jnp.dot(xn, wqkv_ref[...], preferred_element_type=jnp.float32,
                  precision=_MM_PREC) + bqkv_ref[...]

    def split_heads(base):
        cols = [qkv[:, base + hi * d_k: base + (hi + 1) * d_k]
                for hi in range(num_heads)]
        return jnp.stack(cols, axis=0).astype(jnp.bfloat16)   # (h, S, d_k)

    qh = split_heads(0)
    kh = split_heads(D)
    vh = split_heads(2 * D)

    # Batched scores over the leading head axis; contraction on d_k (no k.T relayout).
    scores = jnp.einsum('hsk,htk->hst', qh, kh,
                        preferred_element_type=jnp.float32,
                        precision=_MM_PREC)                   # (h, S, S) f32
    scores = jnp.where(mask_is_zero[None, :, :], jnp.float32(-1e9), scores)
    scores = scores - jnp.max(scores, axis=-1, keepdims=True)
    p = jnp.exp(scores)
    p = p * pl.reciprocal(jnp.sum(p, axis=-1, keepdims=True), approx=True)
    # (attention-prob dropout: inference no-op)

    o = jnp.einsum('hst,htk->hsk', p.astype(jnp.bfloat16), vh,
                   preferred_element_type=jnp.float32,
                   precision=_MM_PREC)                        # (h, S, d_k) f32

    # Concatenate heads on the lane axis and run ONE (S,D)@(D,D) output projection.
    o_cat = jnp.concatenate([o[hi] for hi in range(num_heads)], axis=-1)
    attn = jnp.dot(o_cat.astype(jnp.bfloat16), wo_ref[...],
                   preferred_element_type=jnp.float32,
                   precision=_MM_PREC) + bo_ref[...]
    x = x + attn   # residual add (dropout: inference no-op)

    # ---- residual connection 1: pre-norm + feed-forward (chunked over d_ff) ----
    xn2 = _layer_norm(x, ln_ref[2], ln_ref[3], eps, D).astype(jnp.bfloat16)
    ffn = jnp.zeros((S, D), jnp.float32)
    for c in range(0, d_ff, ffn_chunk):
        hid = jnp.dot(xn2, w1_ref[:, c:c + ffn_chunk],
                      preferred_element_type=jnp.float32,
                      precision=_MM_PREC) + b1_ref[:, c:c + ffn_chunk]
        hid = jnp.maximum(hid, 0.0).astype(jnp.bfloat16)      # ReLU; dropout no-op
        ffn = ffn + jnp.dot(hid, w2_ref[c:c + ffn_chunk, :],
                            preferred_element_type=jnp.float32,
                            precision=_MM_PREC)
    ffn = ffn + b2_ref[...]

    out_ref[0] = x + ffn


def encoder_block_forward(x, src_mask, params, *, num_heads):
    """x: f32 [B, S, D]; src_mask: int [B, 1, S, S]; returns f32 [B, S, D]."""
    B, S, D = x.shape
    d_ff = params["w1"].shape[1]
    assert D % num_heads == 0, "d_model is not divisible by h"
    d_k = D // num_heads
    inv_sqrt_dk = 1.0 / math.sqrt(d_k)

    bf16, f32 = jnp.bfloat16, jnp.float32

    # Fused QKV weight (D, 3D); fold the 1/sqrt(d_k) scale into the Q projection.
    wqkv = jnp.concatenate(
        [params["wq"] * inv_sqrt_dk, params["wk"], params["wv"]], axis=1).astype(bf16)
    bqkv = jnp.concatenate(
        [params["bq"] * inv_sqrt_dk, params["bk"], params["bv"]]).reshape(1, 3 * D).astype(f32)
    wo = params["wo"].astype(bf16)
    bo = params["bo"].reshape(1, D).astype(f32)
    w1 = params["w1"].astype(bf16)
    b1 = params["b1"].reshape(1, d_ff).astype(f32)
    w2 = params["w2"].astype(bf16)
    b2 = params["b2"].reshape(1, D).astype(f32)
    ln = jnp.array([params["alpha1"], params["bias1"],
                    params["alpha2"], params["bias2"]], dtype=f32)

    mask = src_mask.astype(jnp.int8)   # 4x fewer mask bytes per grid step

    # Bound the live (S, d_ff) FFN intermediate at large d_ff.
    ffn_chunk = 512 if d_ff % 512 == 0 else d_ff

    def const_spec(arr):
        # Constant across grid steps -> stays resident; single buffer (no double-buffer).
        nd = arr.ndim
        return pl.BlockSpec(arr.shape, lambda b, nd=nd: (0,) * nd,
                            pipeline_mode=pl.Buffered(1))

    kernel = functools.partial(_encoder_block_kernel,
                               num_heads=num_heads, d_k=d_k, eps=1e-6,
                               ffn_chunk=ffn_chunk)

    flops = B * (2 * S * D * 3 * D           # fused QKV projection
                 + 4 * S * S * D             # scores (q k^T) + pv, all heads
                 + 2 * S * D * D             # output projection
                 + 4 * S * D * d_ff)         # feed-forward
    transcendentals = B * (num_heads * S * S + num_heads * S + 2 * S)
    bytes_accessed = (B * S * D * 4 * 2                       # x in + out (f32)
                      + B * S * S * 1                          # mask (int8)
                      + (3 * D * D + D * D + 2 * D * d_ff) * 2  # bf16 weights (once)
                      + (3 * D + D + d_ff + D + 4) * 4)         # f32 biases + LN scalars

    out = pl.pallas_call(
        kernel,
        out_shape=jax.ShapeDtypeStruct((B, S, D), jnp.float32),
        grid_spec=pltpu.PrefetchScalarGridSpec(
            num_scalar_prefetch=0,
            grid=(B,),
            in_specs=[
                pl.BlockSpec((1, S, D), lambda b: (b, 0, 0)),        # x
                pl.BlockSpec((1, 1, S, S), lambda b: (b, 0, 0, 0)),  # mask (int8)
                const_spec(wqkv), const_spec(bqkv),
                const_spec(wo), const_spec(bo),
                const_spec(w1), const_spec(b1),
                const_spec(w2), const_spec(b2),
                pl.BlockSpec(memory_space=pltpu.MemorySpace.SMEM),   # LayerNorm scalars
            ],
            out_specs=pl.BlockSpec((1, S, D), lambda b: (b, 0, 0)),
        ),
        compiler_params=pltpu.CompilerParams(
            dimension_semantics=("parallel",),
            vmem_limit_bytes=64 * 1024 * 1024,
        ),
        cost_estimate=pl.CostEstimate(
            flops=int(flops),
            transcendentals=int(transcendentals),
            bytes_accessed=int(bytes_accessed),
        ),
    )(x, mask, wqkv, bqkv, wo, bo, w1, b1, w2, b2, ln)

    return out


def _reference_encoder_block(x, src_mask, p, num_heads):
    """Pure-JAX f32 mirror of the PyTorch EncoderBlock (eval mode)."""
    B, S, D = x.shape
    d_k = D // num_heads
    eps = 1e-6

    def ln(t, alpha, bias):
        mean = t.mean(axis=-1, keepdims=True)
        std = jnp.std(t, axis=-1, keepdims=True, ddof=1)
        return alpha * (t - mean) / (std + eps) + bias

    # residual connection 0: self-attention
    xn = ln(x, p["alpha1"], p["bias1"])
    q = xn @ p["wq"] + p["bq"]
    k = xn @ p["wk"] + p["bk"]
    v = xn @ p["wv"] + p["bv"]

    def split(t):
        return t.reshape(B, S, num_heads, d_k).transpose(0, 2, 1, 3)

    qh, kh, vh = split(q), split(k), split(v)
    scores = (qh @ kh.transpose(0, 1, 3, 2)) / math.sqrt(d_k)
    scores = jnp.where(src_mask == 0, -1e9, scores)
    attn = jax.nn.softmax(scores, axis=-1)
    o = (attn @ vh).transpose(0, 2, 1, 3).reshape(B, S, D)
    x = x + (o @ p["wo"] + p["bo"])

    # residual connection 1: feed-forward
    xn2 = ln(x, p["alpha2"], p["bias2"])
    ffn = jnp.maximum(xn2 @ p["w1"] + p["b1"], 0.0) @ p["w2"] + p["b2"]
    return x + ffn


if __name__ == "__main__":
    B, S = 2, 8
    d_model, num_heads, d_ff = 32, 4, 64

    key = jax.random.PRNGKey(0)
    ks = jax.random.split(key, 14)

    params = {
        "wq": 0.1 * jax.random.normal(ks[0], (d_model, d_model), jnp.float32),
        "bq": 0.05 * jax.random.normal(ks[1], (d_model,), jnp.float32),
        "wk": 0.1 * jax.random.normal(ks[2], (d_model, d_model), jnp.float32),
        "bk": 0.05 * jax.random.normal(ks[3], (d_model,), jnp.float32),
        "wv": 0.1 * jax.random.normal(ks[4], (d_model, d_model), jnp.float32),
        "bv": 0.05 * jax.random.normal(ks[5], (d_model,), jnp.float32),
        "wo": 0.1 * jax.random.normal(ks[6], (d_model, d_model), jnp.float32),
        "bo": 0.05 * jax.random.normal(ks[7], (d_model,), jnp.float32),
        "w1": 0.1 * jax.random.normal(ks[8], (d_model, d_ff), jnp.float32),
        "b1": 0.05 * jax.random.normal(ks[9], (d_ff,), jnp.float32),
        "w2": 0.1 * jax.random.normal(ks[10], (d_ff, d_model), jnp.float32),
        "b2": 0.05 * jax.random.normal(ks[11], (d_model,), jnp.float32),
        "alpha1": 1.25, "bias1": 0.1,
        "alpha2": 0.75, "bias2": -0.05,
    }

    x = jax.random.normal(ks[12], (B, S, d_model), jnp.float32)

    # Padding-style source mask: batch 0 sees all 8 keys, batch 1 sees first 6.
    lengths = jnp.array([S, S - 2], dtype=jnp.int32)
    key_visible = (jnp.arange(S)[None, :] < lengths[:, None]).astype(jnp.int32)  # (B, S)
    src_mask = jnp.array(jnp.broadcast_to(key_visible[:, None, None, :], (B, 1, S, S)),
                         dtype=jnp.int32)

    out = encoder_block_forward(x, src_mask, params, num_heads=num_heads)
    out = jax.block_until_ready(out)

    ref = _reference_encoder_block(x, src_mask, params, num_heads)

    assert out.shape == (B, S, d_model), out.shape
    # bf16 matmul operands (f32 accumulation) -> loosened tolerance vs the f32 reference.
    assert jnp.allclose(out, ref, atol=3e-2, rtol=3e-2), (
        "mismatch vs reference: max abs err = "
        f"{float(jnp.max(jnp.abs(out - ref)))}")

    print("KERNEL_OK")
</pallas_src>

<mosaic_0001>
module attributes {stable_mosaic.version = 11 : i64} {
  func.func @_encoder_block_kernel(%arg0: i32, %arg1: memref<1x8x32xf32, #tpu.memory_space<vmem>>, %arg2: memref<1x1x8x8xi8, #tpu.memory_space<vmem>>, %arg3: memref<32x96xbf16, #tpu.memory_space<vmem>>, %arg4: memref<1x96xf32, #tpu.memory_space<vmem>>, %arg5: memref<32x32xbf16, #tpu.memory_space<vmem>>, %arg6: memref<1x32xf32, #tpu.memory_space<vmem>>, %arg7: memref<32x64xbf16, #tpu.memory_space<vmem>>, %arg8: memref<1x64xf32, #tpu.memory_space<vmem>>, %arg9: memref<64x32xbf16, #tpu.memory_space<vmem>>, %arg10: memref<1x32xf32, #tpu.memory_space<vmem>>, %arg11: memref<4xf32, #tpu.memory_space<smem>>, %arg12: memref<1x8x32xf32, #tpu.memory_space<vmem>>) attributes {dimension_semantics = [#tpu.dimension_semantics<parallel>], iteration_bounds = array<i64: 2>, scalar_prefetch = 0 : i64, scratch_operands = 0 : i64, tpu.core_type = #tpu.core_type<tc>, window_params = [{transform_indices = @transform_0, window_bounds = array<i64: 1, 8, 32>}, {transform_indices = @transform_1, window_bounds = array<i64: 1, 1, 8, 8>}, {pipeline_mode = #tpu.pipeline_mode<synchronous>, transform_indices = @transform_2, window_bounds = array<i64: 32, 96>}, {pipeline_mode = #tpu.pipeline_mode<synchronous>, transform_indices = @transform_3, window_bounds = array<i64: 1, 96>}, {pipeline_mode = #tpu.pipeline_mode<synchronous>, transform_indices = @transform_4, window_bounds = array<i64: 32, 32>}, {pipeline_mode = #tpu.pipeline_mode<synchronous>, transform_indices = @transform_5, window_bounds = array<i64: 1, 32>}, {pipeline_mode = #tpu.pipeline_mode<synchronous>, transform_indices = @transform_6, window_bounds = array<i64: 32, 64>}, {pipeline_mode = #tpu.pipeline_mode<synchronous>, transform_indices = @transform_7, window_bounds = array<i64: 1, 64>}, {pipeline_mode = #tpu.pipeline_mode<synchronous>, transform_indices = @transform_8, window_bounds = array<i64: 64, 32>}, {pipeline_mode = #tpu.pipeline_mode<synchronous>, transform_indices = @transform_9, window_bounds = array<i64: 1, 32>}, {transform_indices = @transform_10, window_bounds = array<i64: 4>}, {transform_indices = @transform_11, window_bounds = array<i64: 1, 8, 32>}]} {
    %c0 = arith.constant 0 : index
    %c0_0 = arith.constant 0 : index
    %c0_1 = arith.constant 0 : index
    %0 = vector.load %arg1[%c0, %c0_0, %c0_1] : memref<1x8x32xf32, #tpu.memory_space<vmem>>, vector<1x8x32xf32>
    %1 = vector.shape_cast %0 : vector<1x8x32xf32> to vector<8x32xf32>
    %c0_2 = arith.constant 0 : index
    %c0_3 = arith.constant 0 : index
    %c0_4 = arith.constant 0 : index
    %c0_5 = arith.constant 0 : index
    %2 = vector.load %arg2[%c0_2, %c0_3, %c0_4, %c0_5] : memref<1x1x8x8xi8, #tpu.memory_space<vmem>>, vector<1x1x8x8xi8>
    %3 = vector.shape_cast %2 : vector<1x1x8x8xi8> to vector<8x8xi8>
    %4 = arith.sitofp %3 : vector<8x8xi8> to vector<8x8xf32>
    %cst = arith.constant 0.000000e+00 : f32
    %5 = vector.broadcast %cst : f32 to vector<8x8xf32>
    %6 = arith.cmpf oeq, %4, %5 : vector<8x8xf32>
    %c0_6 = arith.constant 0 : index
    %7 = memref.load %arg11[%c0_6] : memref<4xf32, #tpu.memory_space<smem>>
    %c1 = arith.constant 1 : index
    %8 = memref.load %arg11[%c1] : memref<4xf32, #tpu.memory_space<smem>>
    %cst_7 = arith.constant dense<0.000000e+00> : vector<8xf32>
    %9 = vector.multi_reduction <add>, %1, %cst_7 [1] : vector<8x32xf32> to vector<8xf32>
    %10 = vector.shape_cast %9 : vector<8xf32> to vector<8x1xf32>
    %cst_8 = arith.constant 3.200000e+01 : f32
    %11 = vector.broadcast %cst_8 : f32 to vector<8x1xf32>
    %12 = arith.divf %10, %11 : vector<8x1xf32>
    %13 = vector.broadcast %12 : vector<8x1xf32> to vector<8x32xf32>
    %14 = arith.subf %1, %13 : vector<8x32xf32>
    %15 = arith.mulf %14, %14 : vector<8x32xf32>
    %cst_9 = arith.constant dense<0.000000e+00> : vector<8xf32>
    %16 = vector.multi_reduction <add>, %15, %cst_9 [1] : vector<8x32xf32> to vector<8xf32>
    %17 = vector.shape_cast %16 : vector<8xf32> to vector<8x1xf32>
    %cst_10 = arith.constant 3.100000e+01 : f32
    %18 = vector.broadcast %cst_10 : f32 to vector<8x1xf32>
    %19 = arith.divf %17, %18 : vector<8x1xf32>
    %20 = math.sqrt %19 : vector<8x1xf32>
    %21 = vector.broadcast %7 : f32 to vector<8x32xf32>
    %22 = arith.mulf %21, %14 : vector<8x32xf32>
    %cst_11 = arith.constant 9.99999997E-7 : f32
    %23 = vector.broadcast %cst_11 : f32 to vector<8x1xf32>
    %24 = arith.addf %20, %23 : vector<8x1xf32>
    %25 = vector.broadcast %24 : vector<8x1xf32> to vector<8x32xf32>
    %26 = arith.divf %22, %25 : vector<8x32xf32>
    %27 = vector.broadcast %8 : f32 to vector<8x32xf32>
    %28 = arith.addf %26, %27 : vector<8x32xf32>
    %29 = arith.truncf %28 : vector<8x32xf32> to vector<8x32xbf16>
    %c0_12 = arith.constant 0 : index
    %c0_13 = arith.constant 0 : index
    %30 = vector.load %arg3[%c0_12, %c0_13] : memref<32x96xbf16, #tpu.memory_space<vmem>>, vector<32x96xbf16>
    %cst_14 = arith.constant dense<0.000000e+00> : vector<8x96xf32>
    %31 = tpu.matmul %29, %30, %cst_14 {dimension_numbers = #tpu.dot_dimension_numbers<[1], [0], [0], [1], [0, 0, 1, 1], [], []>} : vector<8x32xbf16>, vector<32x96xbf16>, vector<8x96xf32> -> vector<8x96xf32>
    %c0_15 = arith.constant 0 : index
    %c0_16 = arith.constant 0 : index
    %32 = vector.load %arg4[%c0_15, %c0_16] : memref<1x96xf32, #tpu.memory_space<vmem>>, vector<1x96xf32>
    %33 = vector.broadcast %32 : vector<1x96xf32> to vector<8x96xf32>
    %34 = arith.addf %31, %33 : vector<8x96xf32>
    %35 = vector.extract_strided_slice %34 {offsets = [0, 0], sizes = [8, 8], strides = [1, 1]} : vector<8x96xf32> to vector<8x8xf32>
    %36 = vector.extract_strided_slice %34 {offsets = [0, 8], sizes = [8, 8], strides = [1, 1]} : vector<8x96xf32> to vector<8x8xf32>
    %37 = vector.extract_strided_slice %34 {offsets = [0, 16], sizes = [8, 8], strides = [1, 1]} : vector<8x96xf32> to vector<8x8xf32>
    %38 = vector.extract_strided_slice %34 {offsets = [0, 24], sizes = [8, 8], strides = [1, 1]} : vector<8x96xf32> to vector<8x8xf32>
    %39 = vector.shape_cast %35 : vector<8x8xf32> to vector<1x8x8xf32>
    %40 = vector.shape_cast %36 : vector<8x8xf32> to vector<1x8x8xf32>
    %41 = vector.shape_cast %37 : vector<8x8xf32> to vector<1x8x8xf32>
    %42 = vector.shape_cast %38 : vector<8x8xf32> to vector<1x8x8xf32>
    %43 = tpu.concatenate %39, %40, %41, %42 in 0 : vector<1x8x8xf32>, vector<1x8x8xf32>, vector<1x8x8xf32>, vector<1x8x8xf32> -> vector<4x8x8xf32>
    %44 = arith.truncf %43 : vector<4x8x8xf32> to vector<4x8x8xbf16>
    %45 = vector.extract_strided_slice %34 {offsets = [0, 32], sizes = [8, 8], strides = [1, 1]} : vector<8x96xf32> to vector<8x8xf32>
    %46 = vector.extract_strided_slice %34 {offsets = [0, 40], sizes = [8, 8], strides = [1, 1]} : vector<8x96xf32> to vector<8x8xf32>
    %47 = vector.extract_strided_slice %34 {offsets = [0, 48], sizes = [8, 8], strides = [1, 1]} : vector<8x96xf32> to vector<8x8xf32>
    %48 = vector.extract_strided_slice %34 {offsets = [0, 56], sizes = [8, 8], strides = [1, 1]} : vector<8x96xf32> to vector<8x8xf32>
    %49 = vector.shape_cast %45 : vector<8x8xf32> to vector<1x8x8xf32>
    %50 = vector.shape_cast %46 : vector<8x8xf32> to vector<1x8x8xf32>
    %51 = vector.shape_cast %47 : vector<8x8xf32> to vector<1x8x8xf32>
    %52 = vector.shape_cast %48 : vector<8x8xf32> to vector<1x8x8xf32>
    %53 = tpu.concatenate %49, %50, %51, %52 in 0 : vector<1x8x8xf32>, vector<1x8x8xf32>, vector<1x8x8xf32>, vector<1x8x8xf32> -> vector<4x8x8xf32>
    %54 = arith.truncf %53 : vector<4x8x8xf32> to vector<4x8x8xbf16>
    %55 = vector.extract_strided_slice %34 {offsets = [0, 64], sizes = [8, 8], strides = [1, 1]} : vector<8x96xf32> to vector<8x8xf32>
    %56 = vector.extract_strided_slice %34 {offsets = [0, 72], sizes = [8, 8], strides = [1, 1]} : vector<8x96xf32> to vector<8x8xf32>
    %57 = vector.extract_strided_slice %34 {offsets = [0, 80], sizes = [8, 8], strides = [1, 1]} : vector<8x96xf32> to vector<8x8xf32>
    %58 = vector.extract_strided_slice %34 {offsets = [0, 88], sizes = [8, 8], strides = [1, 1]} : vector<8x96xf32> to vector<8x8xf32>
    %59 = vector.shape_cast %55 : vector<8x8xf32> to vector<1x8x8xf32>
    %60 = vector.shape_cast %56 : vector<8x8xf32> to vector<1x8x8xf32>
    %61 = vector.shape_cast %57 : vector<8x8xf32> to vector<1x8x8xf32>
    %62 = vector.shape_cast %58 : vector<8x8xf32> to vector<1x8x8xf32>
    %63 = tpu.concatenate %59, %60, %61, %62 in 0 : vector<1x8x8xf32>, vector<1x8x8xf32>, vector<1x8x8xf32>, vector<1x8x8xf32> -> vector<4x8x8xf32>
    %64 = arith.truncf %63 : vector<4x8x8xf32> to vector<4x8x8xbf16>
    "tpu.trace_start"() <{level = 10 : i32, message = "hsk,htk->hst"}> : () -> ()
    %cst_17 = arith.constant dense<0.000000e+00> : vector<4x8x8xf32>
    %65 = tpu.matmul %44, %54, %cst_17 {dimension_numbers = #tpu.dot_dimension_numbers<[2], [2], [1], [1], [0, 0, 0, 1, 1, 1], [0], [0]>} : vector<4x8x8xbf16>, vector<4x8x8xbf16>, vector<4x8x8xf32> -> vector<4x8x8xf32>
    "tpu.trace_stop"() : () -> ()
    %66 = vector.shape_cast %6 : vector<8x8xi1> to vector<1x8x8xi1>
    %cst_18 = arith.constant -1.000000e+09 : f32
    %67 = vector.shape_cast %66 : vector<1x8x8xi1> to vector<1x8x8xi1>
    %68 = vector.broadcast %67 : vector<1x8x8xi1> to vector<4x8x8xi1>
    %69 = vector.broadcast %cst_18 : f32 to vector<4x8x8xf32>
    %70 = arith.select %68, %69, %65 : vector<4x8x8xi1>, vector<4x8x8xf32>
    %cst_19 = arith.constant dense<0xFF800000> : vector<4x8xf32>
    %71 = vector.multi_reduction <maximumf>, %70, %cst_19 [2] : vector<4x8x8xf32> to vector<4x8xf32>
    %72 = vector.shape_cast %71 : vector<4x8xf32> to vector<4x8x1xf32>
    %73 = vector.broadcast %72 : vector<4x8x1xf32> to vector<4x8x8xf32>
    %74 = arith.subf %70, %73 : vector<4x8x8xf32>
    %75 = math.exp %74 : vector<4x8x8xf32>
    %cst_20 = arith.constant dense<0.000000e+00> : vector<4x8xf32>
    %76 = vector.multi_reduction <add>, %75, %cst_20 [2] : vector<4x8x8xf32> to vector<4x8xf32>
    %77 = vector.shape_cast %76 : vector<4x8xf32> to vector<4x8x1xf32>
    %78 = tpu.reciprocal %77 {approx = true} : vector<4x8x1xf32> -> vector<4x8x1xf32>
    %79 = vector.broadcast %78 : vector<4x8x1xf32> to vector<4x8x8xf32>
    %80 = arith.mulf %75, %79 : vector<4x8x8xf32>
    %81 = arith.truncf %80 : vector<4x8x8xf32> to vector<4x8x8xbf16>
    "tpu.trace_start"() <{level = 10 : i32, message = "hst,htk->hsk"}> : () -> ()
    %cst_21 = arith.constant dense<0.000000e+00> : vector<4x8x8xf32>
    %82 = tpu.matmul %81, %64, %cst_21 {dimension_numbers = #tpu.dot_dimension_numbers<[2], [1], [1], [2], [0, 0, 0, 1, 1, 2], [0], [0]>} : vector<4x8x8xbf16>, vector<4x8x8xbf16>, vector<4x8x8xf32> -> vector<4x8x8xf32>
    "tpu.trace_stop"() : () -> ()
    %83 = vector.extract_strided_slice %82 {offsets = [0, 0, 0], sizes = [1, 8, 8], strides = [1, 1, 1]} : vector<4x8x8xf32> to vector<1x8x8xf32>
    %84 = vector.shape_cast %83 : vector<1x8x8xf32> to vector<8x8xf32>
    %85 = vector.extract_strided_slice %82 {offsets = [1, 0, 0], sizes = [1, 8, 8], strides = [1, 1, 1]} : vector<4x8x8xf32> to vector<1x8x8xf32>
    %86 = vector.shape_cast %85 : vector<1x8x8xf32> to vector<8x8xf32>
    %87 = vector.extract_strided_slice %82 {offsets = [2, 0, 0], sizes = [1, 8, 8], strides = [1, 1, 1]} : vector<4x8x8xf32> to vector<1x8x8xf32>
    %88 = vector.shape_cast %87 : vector<1x8x8xf32> to vector<8x8xf32>
    %89 = vector.extract_strided_slice %82 {offsets = [3, 0, 0], sizes = [1, 8, 8], strides = [1, 1, 1]} : vector<4x8x8xf32> to vector<1x8x8xf32>
    %90 = vector.shape_cast %89 : vector<1x8x8xf32> to vector<8x8xf32>
    %91 = tpu.concatenate %84, %86, %88, %90 in 1 : vector<8x8xf32>, vector<8x8xf32>, vector<8x8xf32>, vector<8x8xf32> -> vector<8x32xf32>
    %92 = arith.truncf %91 : vector<8x32xf32> to vector<8x32xbf16>
    %c0_22 = arith.constant 0 : index
    %c0_23 = arith.constant 0 : index
    %93 = vector.load %arg5[%c0_22, %c0_23] : memref<32x32xbf16, #tpu.memory_space<vmem>>, vector<32x32xbf16>
    %cst_24 = arith.constant dense<0.000000e+00> : vector<8x32xf32>
    %94 = tpu.matmul %92, %93, %cst_24 {dimension_numbers = #tpu.dot_dimension_numbers<[1], [0], [0], [1], [0, 0, 1, 1], [], []>} : vector<8x32xbf16>, vector<32x32xbf16>, vector<8x32xf32> -> vector<8x32xf32>
    %c0_25 = arith.constant 0 : index
    %c0_26 = arith.constant 0 : index
    %95 = vector.load %arg6[%c0_25, %c0_26] : memref<1x32xf32, #tpu.memory_space<vmem>>, vector<1x32xf32>
    %96 = vector.broadcast %95 : vector<1x32xf32> to vector<8x32xf32>
    %97 = arith.addf %94, %96 : vector<8x32xf32>
    %98 = arith.addf %1, %97 : vector<8x32xf32>
    %c2 = arith.constant 2 : index
    %99 = memref.load %arg11[%c2] : memref<4xf32, #tpu.memory_space<smem>>
    %c3 = arith.constant 3 : index
    %100 = memref.load %arg11[%c3] : memref<4xf32, #tpu.memory_space<smem>>
    %cst_27 = arith.constant dense<0.000000e+00> : vector<8xf32>
    %101 = vector.multi_reduction <add>, %98, %cst_27 [1] : vector<8x32xf32> to vector<8xf32>
    %102 = vector.shape_cast %101 : vector<8xf32> to vector<8x1xf32>
    %cst_28 = arith.constant 3.200000e+01 : f32
    %103 = vector.broadcast %cst_28 : f32 to vector<8x1xf32>
    %104 = arith.divf %102, %103 : vector<8x1xf32>
    %105 = vector.broadcast %104 : vector<8x1xf32> to vector<8x32xf32>
    %106 = arith.subf %98, %105 : vector<8x32xf32>
    %107 = arith.mulf %106, %106 : vector<8x32xf32>
    %cst_29 = arith.constant dense<0.000000e+00> : vector<8xf32>
    %108 = vector.multi_reduction <add>, %107, %cst_29 [1] : vector<8x32xf32> to vector<8xf32>
    %109 = vector.shape_cast %108 : vector<8xf32> to vector<8x1xf32>
    %cst_30 = arith.constant 3.100000e+01 : f32
    %110 = vector.broadcast %cst_30 : f32 to vector<8x1xf32>
    %111 = arith.divf %109, %110 : vector<8x1xf32>
    %112 = math.sqrt %111 : vector<8x1xf32>
    %113 = vector.broadcast %99 : f32 to vector<8x32xf32>
    %114 = arith.mulf %113, %106 : vector<8x32xf32>
    %cst_31 = arith.constant 9.99999997E-7 : f32
    %115 = vector.broadcast %cst_31 : f32 to vector<8x1xf32>
    %116 = arith.addf %112, %115 : vector<8x1xf32>
    %117 = vector.broadcast %116 : vector<8x1xf32> to vector<8x32xf32>
    %118 = arith.divf %114, %117 : vector<8x32xf32>
    %119 = vector.broadcast %100 : f32 to vector<8x32xf32>
    %120 = arith.addf %118, %119 : vector<8x32xf32>
    %121 = arith.truncf %120 : vector<8x32xf32> to vector<8x32xbf16>
    %cst_32 = arith.constant 0.000000e+00 : f32
    %122 = vector.broadcast %cst_32 : f32 to vector<8x32xf32>
    %c0_33 = arith.constant 0 : index
    %c0_34 = arith.constant 0 : index
    %123 = vector.load %arg7[%c0_33, %c0_34] : memref<32x64xbf16, #tpu.memory_space<vmem>>, vector<32x64xbf16>
    %cst_35 = arith.constant dense<0.000000e+00> : vector<8x64xf32>
    %124 = tpu.matmul %121, %123, %cst_35 {dimension_numbers = #tpu.dot_dimension_numbers<[1], [0], [0], [1], [0, 0, 1, 1], [], []>} : vector<8x32xbf16>, vector<32x64xbf16>, vector<8x64xf32> -> vector<8x64xf32>
    %c0_36 = arith.constant 0 : index
    %c0_37 = arith.constant 0 : index
    %125 = vector.load %arg8[%c0_36, %c0_37] : memref<1x64xf32, #tpu.memory_space<vmem>>, vector<1x64xf32>
    %126 = vector.broadcast %125 : vector<1x64xf32> to vector<8x64xf32>
    %127 = arith.addf %124, %126 : vector<8x64xf32>
    %cst_38 = arith.constant 0.000000e+00 : f32
    %128 = vector.broadcast %cst_38 : f32 to vector<8x64xf32>
    %129 = arith.maximumf %127, %128 : vector<8x64xf32>
    %130 = arith.truncf %129 : vector<8x64xf32> to vector<8x64xbf16>
    %c0_39 = arith.constant 0 : index
    %c0_40 = arith.constant 0 : index
    %131 = vector.load %arg9[%c0_39, %c0_40] : memref<64x32xbf16, #tpu.memory_space<vmem>>, vector<64x32xbf16>
    %cst_41 = arith.constant dense<0.000000e+00> : vector<8x32xf32>
    %132 = tpu.matmul %130, %131, %cst_41 {dimension_numbers = #tpu.dot_dimension_numbers<[1], [0], [0], [1], [0, 0, 1, 1], [], []>} : vector<8x64xbf16>, vector<64x32xbf16>, vector<8x32xf32> -> vector<8x32xf32>
    %133 = arith.addf %122, %132 : vector<8x32xf32>
    %c0_42 = arith.constant 0 : index
    %c0_43 = arith.constant 0 : index
    %134 = vector.load %arg10[%c0_42, %c0_43] : memref<1x32xf32, #tpu.memory_space<vmem>>, vector<1x32xf32>
    %135 = vector.broadcast %134 : vector<1x32xf32> to vector<8x32xf32>
    %136 = arith.addf %133, %135 : vector<8x32xf32>
    %137 = arith.addf %98, %136 : vector<8x32xf32>
    %c0_44 = arith.constant 0 : index
    %c0_45 = arith.constant 0 : index
    %c0_46 = arith.constant 0 : index
    %138 = vector.load %arg12[%c0_44, %c0_45, %c0_46] : memref<1x8x32xf32, #tpu.memory_space<vmem>>, vector<1x8x32xf32>
    %139 = vector.shape_cast %138 : vector<1x8x32xf32> to vector<8x32xf32>
    %140 = vector.shape_cast %137 : vector<8x32xf32> to vector<1x8x32xf32>
    tpu.vector_store %arg12[%c0_44, %c0_45, %c0_46], %140 {strides = array<i32>} : memref<1x8x32xf32, #tpu.memory_space<vmem>>, vector<1x8x32xf32>,
    return
  }
  func.func @transform_0(%arg0: i32) -> (i32, i32, i32) {
    %c0_i32 = arith.constant 0 : i32
    %c0_i32_0 = arith.constant 0 : i32
    %c0_i32_1 = arith.constant 0 : i32
    return %arg0, %c0_i32, %c0_i32_0 : i32, i32, i32
  }
  func.func @transform_1(%arg0: i32) -> (i32, i32, i32, i32) {
    %c0_i32 = arith.constant 0 : i32
    %c0_i32_0 = arith.constant 0 : i32
    %c0_i32_1 = arith.constant 0 : i32
    %c0_i32_2 = arith.constant 0 : i32
    return %arg0, %c0_i32, %c0_i32_0, %c0_i32_1 : i32, i32, i32, i32
  }
  func.func @transform_2(%arg0: i32) -> (i32, i32) {
    %c0_i32 = arith.constant 0 : i32
    %c0_i32_0 = arith.constant 0 : i32
    %c0_i32_1 = arith.constant 0 : i32
    return %c0_i32, %c0_i32_0 : i32, i32
  }
  func.func @transform_3(%arg0: i32) -> (i32, i32) {
    %c0_i32 = arith.constant 0 : i32
    %c0_i32_0 = arith.constant 0 : i32
    %c0_i32_1 = arith.constant 0 : i32
    return %c0_i32, %c0_i32_0 : i32, i32
  }
  func.func @transform_4(%arg0: i32) -> (i32, i32) {
    %c0_i32 = arith.constant 0 : i32
    %c0_i32_0 = arith.constant 0 : i32
    %c0_i32_1 = arith.constant 0 : i32
    return %c0_i32, %c0_i32_0 : i32, i32
  }
  func.func @transform_5(%arg0: i32) -> (i32, i32) {
    %c0_i32 = arith.constant 0 : i32
    %c0_i32_0 = arith.constant 0 : i32
    %c0_i32_1 = arith.constant 0 : i32
    return %c0_i32, %c0_i32_0 : i32, i32
  }
  func.func @transform_6(%arg0: i32) -> (i32, i32) {
    %c0_i32 = arith.constant 0 : i32
    %c0_i32_0 = arith.constant 0 : i32
    %c0_i32_1 = arith.constant 0 : i32
    return %c0_i32, %c0_i32_0 : i32, i32
  }
  func.func @transform_7(%arg0: i32) -> (i32, i32) {
    %c0_i32 = arith.constant 0 : i32
    %c0_i32_0 = arith.constant 0 : i32
    %c0_i32_1 = arith.constant 0 : i32
    return %c0_i32, %c0_i32_0 : i32, i32
  }
  func.func @transform_8(%arg0: i32) -> (i32, i32) {
    %c0_i32 = arith.constant 0 : i32
    %c0_i32_0 = arith.constant 0 : i32
    %c0_i32_1 = arith.constant 0 : i32
    return %c0_i32, %c0_i32_0 : i32, i32
  }
  func.func @transform_9(%arg0: i32) -> (i32, i32) {
    %c0_i32 = arith.constant 0 : i32
    %c0_i32_0 = arith.constant 0 : i32
    %c0_i32_1 = arith.constant 0 : i32
    return %c0_i32, %c0_i32_0 : i32, i32
  }
  func.func @transform_10(%arg0: i32) -> i32 {
    %c0_i32 = arith.constant 0 : i32
    %c0_i32_0 = arith.constant 0 : i32
    return %c0_i32 : i32
  }
  func.func @transform_11(%arg0: i32) -> (i32, i32, i32) {
    %c0_i32 = arith.constant 0 : i32
    %c0_i32_0 = arith.constant 0 : i32
    %c0_i32_1 = arith.constant 0 : i32
    return %arg0, %c0_i32, %c0_i32_0 : i32, i32, i32
  }
}

</mosaic_0001>

<llo_original>
// kernel: tpu_custom_call.1
$region0: #{tpu_custom_call.1}
  #allocation0 [shape = 'u32[]', space=smem, size = 0x4, offset = 0x4, fixed_abs, tag = 'smem constant byte address 0x4 - core index']
  #allocation1 [shape = 'u32[144,128]{1,0:T(1,128)}', space=vmem, size = 0x12000, scoped, tag = 'internal scratch']
  %s0 = inlined_call_operand.hbm [shape: f32[2,8,32], index: 0, kind: input, shape index: {}]
  %s1 = inlined_call_operand.hbm [shape: s8[2,1,8,8], index: 1, kind: input, shape index: {}]
  %s2 = inlined_call_operand.hbm [shape: bf16[32,96], index: 2, kind: input, shape index: {}]
  %s3 = inlined_call_operand.hbm [shape: f32[1,96], index: 3, kind: input, shape index: {}]
  %s4 = inlined_call_operand.hbm [shape: bf16[32,32], index: 4, kind: input, shape index: {}]
  %s5 = inlined_call_operand.hbm [shape: f32[1,32], index: 5, kind: input, shape index: {}]
  %s6 = inlined_call_operand.hbm [shape: bf16[32,64], index: 6, kind: input, shape index: {}]
  %s7 = inlined_call_operand.hbm [shape: f32[1,64], index: 7, kind: input, shape index: {}]
  %s8 = inlined_call_operand.hbm [shape: bf16[64,32], index: 8, kind: input, shape index: {}]
  %s9 = inlined_call_operand.hbm [shape: f32[1,32], index: 9, kind: input, shape index: {}]
  %s10 = inlined_call_operand.hbm [shape: f32[4], index: 10, kind: input, shape index: {}]
  %s11 = inlined_call_operand.hbm [shape: f32[2,8,32], index: 11, kind: output, shape index: {}]
  %s12 = sld [smem:[#allocation0]]
  $region121: #{tpu_custom_call.1} parent=0
    _
  %s14 = ssub.s32 1, %s12
  %s15 = scalar_select 0, %s14, %s12
  $region1: #{tpu_custom_call.1} parent=0
    #allocation2 [shape = 'u8[8192]{0}', space=vmem, size = 0x2000, scoped, tag = 'input window, operand 0']
    #allocation3 [shape = 's32[2]{0}', space=sflag, size = 0x8, scoped, tag = 'scoped memory for tpu_custom_call.1']
    #allocation4 [shape = 's32[2]{0}', space=sflag, size = 0x8, scoped, tag = 'scoped memory for tpu_custom_call.1']
    #allocation5 [shape = 's32[2]{0}', space=sflag, size = 0x8, scoped, tag = 'scoped memory for tpu_custom_call.1']
    #allocation6 [shape = 'u8[2048]{0}', space=vmem, size = 0x800, scoped, tag = 'input window, operand 1']
    #allocation7 [shape = 's32[2]{0}', space=sflag, size = 0x8, scoped, tag = 'scoped memory for tpu_custom_call.1']
    #allocation8 [shape = 'u8[8192]{0}', space=vmem, size = 0x2000, scoped, tag = 'input window, operand 2, single buffered']
    #allocation9 [shape = 'u8[512]{0}', space=vmem, size = 0x400, scoped, tag = 'input window, operand 3, single buffered']
    #allocation10 [shape = 's32[1]{0}', space=sflag, size = 0x4, scoped, tag = 'scoped memory for tpu_custom_call.1']
    #allocation11 [shape = 'u8[8192]{0}', space=vmem, size = 0x2000, scoped, tag = 'input window, operand 4, single buffered']
    #allocation12 [shape = 'u8[512]{0}', space=vmem, size = 0x400, scoped, tag = 'input window, operand 5, single buffered']
    #allocation13 [shape = 's32[1]{0}', space=sflag, size = 0x4, scoped, tag = 'scoped memory for tpu_custom_call.1']
    #allocation14 [shape = 'u8[8192]{0}', space=vmem, size = 0x2000, scoped, tag = 'input window, operand 6, single buffered']
    #allocation15 [shape = 'u8[512]{0}', space=vmem, size = 0x400, scoped, tag = 'input window, operand 7, single buffered']
    #allocation16 [shape = 's32[1]{0}', space=sflag, size = 0x4, scoped, tag = 'scoped memory for tpu_custom_call.1']
    #allocation17 [shape = 'u8[16384]{0}', space=vmem, size = 0x4000, scoped, tag = 'input window, operand 8, single buffered']
    #allocation18 [shape = 'u8[512]{0}', space=vmem, size = 0x400, scoped, tag = 'input window, operand 9, single buffered']
    #allocation19 [shape = 's32[1]{0}', space=sflag, size = 0x4, scoped, tag = 'scoped memory for tpu_custom_call.1']
    #allocation20 [shape = 'u8[512]{0}', space=smem, size = 0x200, scoped, tag = 'input window, operand 10, single buffered']
    #allocation21 [shape = 'u8[8192]{0}', space=vmem, size = 0x2000, scoped, tag = 'output window, operand 0']
    %16 = vsyncpa [#allocation3], 0
    %s17 = scalar_lea.sflag [#allocation3], 1
    %18 = vsyncpa %s17, 0
    %19 = vsyncpa [#allocation7], 0
    %s20 = scalar_lea.sflag [#allocation7], 1
    %21 = vsyncpa %s20, 0
    %22 = vsyncpa [#allocation10], 0
    %23 = vsyncpa [#allocation13], 0
    %24 = vsyncpa [#allocation16], 0
    %25 = vsyncpa [#allocation19], 0
    %26 = vsyncpa [#allocation5], 0
    %27 = vsyncpa [#allocation4], 0
    %s28 = scalar_lea.sflag [#allocation4], 1
    %29 = vsyncpa %s28, 0
    loop: start=0, step=1, limit=4
    $region2: #{tpu_custom_call.1} parent=1 // loop_pre_header
      _
    $region3: #{tpu_custom_call.1} parent=1 // loop_header
      %s31 = sphi 0, %s35
      %p32 = scmp.ge.s32.totalorder %s31, 4
      %s41 = sphi 0, %s43
      %s44 = sphi 0, %s41
      %s45 = sphi 0, %s44
      %s61 = sphi 0, %s45
      %s67 = sphi 0, %s69
      %s70 = sphi 0, %s67
      %s71 = sphi 0, %s70
      %s87 = sphi 0, %s71
      %s91 = sphi 0, %s91
      %s93 = sphi 0, %s91
      %s94 = sphi 0, %s93
      %s108 = sphi 0, %s94
      %s112 = sphi 0, %s112
      %s114 = sphi 0, %s112
      %s115 = sphi 0, %s114
      %s129 = sphi 0, %s115
      %s133 = sphi 0, %s133
      %s135 = sphi 0, %s133
      %s136 = sphi 0, %s135
      %s150 = sphi 0, %s136
      %s154 = sphi 0, %s154
      %s156 = sphi 0, %s154
      %s157 = sphi 0, %s156
      %s171 = sphi 0, %s157
      %s175 = sphi 0, %s175
      %s177 = sphi 0, %s175
      %s178 = sphi 0, %s177
      %s192 = sphi 0, %s178
      %s196 = sphi 0, %s196
      %s198 = sphi 0, %s196
      %s199 = sphi 0, %s198
      %s213 = sphi 0, %s199
      %s217 = sphi 0, %s217
      %s219 = sphi 0, %s217
      %s220 = sphi 0, %s219
      %s234 = sphi 0, %s220
      %s238 = sphi 0, %s238
      %s240 = sphi 0, %s238
      %s241 = sphi 0, %s240
      %s255 = sphi 0, %s241
      %s259 = sphi 0, %s259
      %s261 = sphi 0, %s259
      %s262 = sphi 0, %s261
      %s276 = sphi 0, %s262
      %s282 = sphi 0, %s284
      %s285 = sphi 0, %s282
      %s286 = sphi 0, %s285
      %s302 = sphi 0, %s286
    $region4: #{tpu_custom_call.1} parent=1 // loop_header_branch
      %34 = sbr.rel (%p32) target = $region8
    $region5: #{tpu_custom_call.1} parent=1 // loop_body
      %s36 = ssub.s32 %s31, 1
      %s37 = ssub.s32 %s31, 2
      %s38 = sadd.s32 %s31, 1
      %s39 = ssub.s32 %s31, %s38
      %p40 = scmp.eq.s32.totalorder %s39, 0
      %s42 = sadd.s32 %s41, 1
      %s43 = scalar_select %p40, %s41, %s42
      %p46 = pneg %p40
      %p47 = scmp.eq.s32.totalorder %s31, 1
      %p48 = por %p46, %p47
      %p49 = scmp.ne.s32.totalorder %s41, %s44
      %p50 = scmp.eq.s32.totalorder %s31, 0
      %p51 = por %p49, %p50
      %p52 = scmp.ne.s32.totalorder %s41, %s44
      %p53 = scmp.eq.s32.totalorder %s36, 1
      %p54 = por %p52, %p53
      %p55 = scmp.ne.s32.totalorder %s44, %s45
      %p56 = scmp.eq.s32.totalorder %s36, 0
      %p57 = por %p55, %p56
      %p58 = scmp.ne.s32.totalorder %s44, %s45
      %p59 = scmp.eq.s32.totalorder %s37, 1
      %p60 = por %p58, %p59
      %p62 = scmp.ne.s32.totalorder %s45, %s61
      %p63 = scmp.eq.s32.totalorder %s37, 0
      %p64 = por %p62, %p63
      %s65 = ssub.s32 %s31, %s38
      %p66 = scmp.eq.s32.totalorder %s65, 0
      %s68 = sadd.s32 %s67, 1
      %s69 = scalar_select %p66, %s67, %s68
      %p72 = pneg %p66
      %p73 = scmp.eq.s32.totalorder %s31, 1
      %p74 = por %p72, %p73
      %p75 = scmp.ne.s32.totalorder %s67, %s70
      %p76 = scmp.eq.s32.totalorder %s31, 0
      %p77 = por %p75, %p76
      %p78 = scmp.ne.s32.totalorder %s67, %s70
      %p79 = scmp.eq.s32.totalorder %s36, 1
      %p80 = por %p78, %p79
      %p81 = scmp.ne.s32.totalorder %s70, %s71
      %p82 = scmp.eq.s32.totalorder %s36, 0
      %p83 = por %p81, %p82
      %p84 = scmp.ne.s32.totalorder %s70, %s71
      %p85 = scmp.eq.s32.totalorder %s37, 1
      %p86 = por %p84, %p85
      %p88 = scmp.ne.s32.totalorder %s71, %s87
      %p89 = scmp.eq.s32.totalorder %s37, 0
      %p90 = por %p88, %p89
      %s92 = sadd.s32 %s91, 1
      %p95 = scmp.eq.s32.totalorder %s31, 1
      %p96 = scmp.ne.s32.totalorder %s91, %s93
      %p97 = scmp.eq.s32.totalorder %s31, 0
      %p98 = por %p96, %p97
      %p99 = scmp.ne.s32.totalorder %s91, %s93
      %p100 = scmp.eq.s32.totalorder %s36, 1
      %p101 = por %p99, %p100
      %p102 = scmp.ne.s32.totalorder %s93, %s94
      %p103 = scmp.eq.s32.totalorder %s36, 0
      %p104 = por %p102, %p103
      %p105 = scmp.ne.s32.totalorder %s93, %s94
      %p106 = scmp.eq.s32.totalorder %s37, 1
      %p107 = por %p105, %p106
      %p109 = scmp.ne.s32.totalorder %s94, %s108
      %p110 = scmp.eq.s32.totalorder %s37, 0
      %p111 = por %p109, %p110
      %s113 = sadd.s32 %s112, 1
      %p116 = scmp.eq.s32.totalorder %s31, 1
      %p117 = scmp.ne.s32.totalorder %s112, %s114
      %p118 = scmp.eq.s32.totalorder %s31, 0
      %p119 = por %p117, %p118
      %p120 = scmp.ne.s32.totalorder %s112, %s114
      %p121 = scmp.eq.s32.totalorder %s36, 1
      %p122 = por %p120, %p121
      %p123 = scmp.ne.s32.totalorder %s114, %s115
      %p124 = scmp.eq.s32.totalorder %s36, 0
      %p125 = por %p123, %p124
      %p126 = scmp.ne.s32.totalorder %s114, %s115
      %p127 = scmp.eq.s32.totalorder %s37, 1
      %p128 = por %p126, %p127
      %p130 = scmp.ne.s32.totalorder %s115, %s129
      %p131 = scmp.eq.s32.totalorder %s37, 0
      %p132 = por %p130, %p131
      %s134 = sadd.s32 %s133, 1
      %p137 = scmp.eq.s32.totalorder %s31, 1
      %p138 = scmp.ne.s32.totalorder %s133, %s135
      %p139 = scmp.eq.s32.totalorder %s31, 0
      %p140 = por %p138, %p139
      %p141 = scmp.ne.s32.totalorder %s133, %s135
      %p142 = scmp.eq.s32.totalorder %s36, 1
      %p143 = por %p141, %p142
      %p144 = scmp.ne.s32.totalorder %s135, %s136
      %p145 = scmp.eq.s32.totalorder %s36, 0
      %p146 = por %p144, %p145
      %p147 = scmp.ne.s32.totalorder %s135, %s136
      %p148 = scmp.eq.s32.totalorder %s37, 1
      %p149 = por %p147, %p148
      %p151 = scmp.ne.s32.totalorder %s136, %s150
      %p152 = scmp.eq.s32.totalorder %s37, 0
      %p153 = por %p151, %p152
      %s155 = sadd.s32 %s154, 1
      %p158 = scmp.eq.s32.totalorder %s31, 1
      %p159 = scmp.ne.s32.totalorder %s154, %s156
      %p160 = scmp.eq.s32.totalorder %s31, 0
      %p161 = por %p159, %p160
      %p162 = scmp.ne.s32.totalorder %s154, %s156
      %p163 = scmp.eq.s32.totalorder %s36, 1
      %p164 = por %p162, %p163
      %p165 = scmp.ne.s32.totalorder %s156, %s157
      %p166 = scmp.eq.s32.totalorder %s36, 0
      %p167 = por %p165, %p166
      %p168 = scmp.ne.s32.totalorder %s156, %s157
      %p169 = scmp.eq.s32.totalorder %s37, 1
      %p170 = por %p168, %p169
      %p172 = scmp.ne.s32.totalorder %s157, %s171
      %p173 = scmp.eq.s32.totalorder %s37, 0
      %p174 = por %p172, %p173
      %s176 = sadd.s32 %s175, 1
      %p179 = scmp.eq.s32.totalorder %s31, 1
      %p180 = scmp.ne.s32.totalorder %s175, %s177
      %p181 = scmp.eq.s32.totalorder %s31, 0
      %p182 = por %p180, %p181
      %p183 = scmp.ne.s32.totalorder %s175, %s177
      %p184 = scmp.eq.s32.totalorder %s36, 1
      %p185 = por %p183, %p184
      %p186 = scmp.ne.s32.totalorder %s177, %s178
      %p187 = scmp.eq.s32.totalorder %s36, 0
      %p188 = por %p186, %p187
      %p189 = scmp.ne.s32.totalorder %s177, %s178
      %p190 = scmp.eq.s32.totalorder %s37, 1
      %p191 = por %p189, %p190
      %p193 = scmp.ne.s32.totalorder %s178, %s192
      %p194 = scmp.eq.s32.totalorder %s37, 0
      %p195 = por %p193, %p194
      %s197 = sadd.s32 %s196, 1
      %p200 = scmp.eq.s32.totalorder %s31, 1
      %p201 = scmp.ne.s32.totalorder %s196, %s198
      %p202 = scmp.eq.s32.totalorder %s31, 0
      %p203 = por %p201, %p202
      %p204 = scmp.ne.s32.totalorder %s196, %s198
      %p205 = scmp.eq.s32.totalorder %s36, 1
      %p206 = por %p204, %p205
      %p207 = scmp.ne.s32.totalorder %s198, %s199
      %p208 = scmp.eq.s32.totalorder %s36, 0
      %p209 = por %p207, %p208
      %p210 = scmp.ne.s32.totalorder %s198, %s199
      %p211 = scmp.eq.s32.totalorder %s37, 1
      %p212 = por %p210, %p211
      %p214 = scmp.ne.s32.totalorder %s199, %s213
      %p215 = scmp.eq.s32.totalorder %s37, 0
      %p216 = por %p214, %p215
      %s218 = sadd.s32 %s217, 1
      %p221 = scmp.eq.s32.totalorder %s31, 1
      %p222 = scmp.ne.s32.totalorder %s217, %s219
      %p223 = scmp.eq.s32.totalorder %s31, 0
      %p224 = por %p222, %p223
      %p225 = scmp.ne.s32.totalorder %s217, %s219
      %p226 = scmp.eq.s32.totalorder %s36, 1
      %p227 = por %p225, %p226
      %p228 = scmp.ne.s32.totalorder %s219, %s220
      %p229 = scmp.eq.s32.totalorder %s36, 0
      %p230 = por %p228, %p229
      %p231 = scmp.ne.s32.totalorder %s219, %s220
      %p232 = scmp.eq.s32.totalorder %s37, 1
      %p233 = por %p231, %p232
      %p235 = scmp.ne.s32.totalorder %s220, %s234
      %p236 = scmp.eq.s32.totalorder %s37, 0
      %p237 = por %p235, %p236
      %s239 = sadd.s32 %s238, 1
      %p242 = scmp.eq.s32.totalorder %s31, 1
      %p243 = scmp.ne.s32.totalorder %s238, %s240
      %p244 = scmp.eq.s32.totalorder %s31, 0
      %p245 = por %p243, %p244
      %p246 = scmp.ne.s32.totalorder %s238, %s240
      %p247 = scmp.eq.s32.totalorder %s36, 1
      %p248 = por %p246, %p247
      %p249 = scmp.ne.s32.totalorder %s240, %s241
      %p250 = scmp.eq.s32.totalorder %s36, 0
      %p251 = por %p249, %p250
      %p252 = scmp.ne.s32.totalorder %s240, %s241
      %p253 = scmp.eq.s32.totalorder %s37, 1
      %p254 = por %p252, %p253
      %p256 = scmp.ne.s32.totalorder %s241, %s255
      %p257 = scmp.eq.s32.totalorder %s37, 0
      %p258 = por %p256, %p257
      %s260 = sadd.s32 %s259, 1
      %p263 = scmp.eq.s32.totalorder %s31, 1
      %p264 = scmp.ne.s32.totalorder %s259, %s261
      %p265 = scmp.eq.s32.totalorder %s31, 0
      %p266 = por %p264, %p265
      %p267 = scmp.ne.s32.totalorder %s259, %s261
      %p268 = scmp.eq.s32.totalorder %s36, 1
      %p269 = por %p267, %p268
      %p270 = scmp.ne.s32.totalorder %s261, %s262
      %p271 = scmp.eq.s32.totalorder %s36, 0
      %p272 = por %p270, %p271
      %p273 = scmp.ne.s32.totalorder %s261, %s262
      %p274 = scmp.eq.s32.totalorder %s37, 1
      %p275 = por %p273, %p274
      %p277 = scmp.ne.s32.totalorder %s262, %s276
      %p278 = scmp.eq.s32.totalorder %s37, 0
      %p279 = por %p277, %p278
      %s280 = ssub.s32 %s31, %s38
      %p281 = scmp.eq.s32.totalorder %s280, 0
      %s283 = sadd.s32 %s282, 1
      %s284 = scalar_select %p281, %s282, %s283
      %p287 = pneg %p281
      %p288 = scmp.eq.s32.totalorder %s31, 1
      %p289 = por %p287, %p288
      %p290 = scmp.ne.s32.totalorder %s282, %s285
      %p291 = scmp.eq.s32.totalorder %s31, 0
      %p292 = por %p290, %p291
      %p293 = scmp.ne.s32.totalorder %s282, %s285
      %p294 = scmp.eq.s32.totalorder %s36, 1
      %p295 = por %p293, %p294
      %p296 = scmp.ne.s32.totalorder %s285, %s286
      %p297 = scmp.eq.s32.totalorder %s36, 0
      %p298 = por %p296, %p297
      %p299 = scmp.ne.s32.totalorder %s285, %s286
      %p300 = scmp.eq.s32.totalorder %s37, 1
      %p301 = por %p299, %p300
      %p303 = scmp.ne.s32.totalorder %s286, %s302
      %p304 = scmp.eq.s32.totalorder %s37, 0
      %p305 = por %p303, %p304
      %p306 = scmp.le.s32.totalorder 1, %s31
      %p307 = scmp.lt.s32.totalorder %s31, 3
      %p308 = pnand %p306, %p307
      %p309 = pneg %p308
      // Predicated region
      $region9: #{tpu_custom_call.1} parent=5 // pred_check
        _
      $region10: #{tpu_custom_call.1} parent=5 // pred_check_branch
        %311 = sbr.rel (%p308) target = $region12
      $region11: #{tpu_custom_call.1} parent=5 // pred_region
        %s312 = ssub.s32 %s31, 1
        // Predicated region
        $region13: #{tpu_custom_call.1} parent=11 // pred_check
          %p313 = pneg %p104
        $region14: #{tpu_custom_call.1} parent=11 // pred_check_branch
          %315 = sbr.rel (%p313) target = $region16
        $region15: #{tpu_custom_call.1} parent=11 // pred_region
          %s317 = ssub.s32 256, 256
          %318 = vsyncadd [#allocation7], %s317
          %s319 = sshll.u32 [#allocation8], 4
          %s320 = int_to_ptr.vmem [resolvable:$true] %s319
          %325 = dma.hbm_to_vmem [thread:$0]  %s2, 256, %s320, [#allocation7], 64, 64, 4
        $region16: #{tpu_custom_call.1} parent=11 // pred_fallthru
          _
        // Predicated region
        $region17: #{tpu_custom_call.1} parent=11 // pred_check
          %p326 = pneg %p125
        $region18: #{tpu_custom_call.1} parent=11 // pred_check_branch
          %328 = sbr.rel (%p326) target = $region20
        $region19: #{tpu_custom_call.1} parent=11 // pred_region
          %s330 = ssub.s32 16, 16
          %331 = vsyncadd [#allocation10], %s330
          %s333 = sshll.u32 [#allocation9], 4
          %s334 = int_to_ptr.vmem [resolvable:$true] %s333
          %336 = dma.hbm_to_vmem [thread:$0]  %s3, 16, %s334, [#allocation10]
        $region20: #{tpu_custom_call.1} parent=11 // pred_fallthru
          _
        // Predicated region
        $region21: #{tpu_custom_call.1} parent=11 // pred_check
          %p337 = pneg %p146
        $region22: #{tpu_custom_call.1} parent=11 // pred_check_branch
          %339 = sbr.rel (%p337) target = $region24
        $region23: #{tpu_custom_call.1} parent=11 // pred_region
          %s341 = ssub.s32 256, 256
          %342 = vsyncadd [#allocation10], %s341
          %s343 = sshll.u32 [#allocation11], 4
          %s344 = int_to_ptr.vmem [resolvable:$true] %s343
          %349 = dma.hbm_to_vmem [thread:$0]  %s4, 256, %s344, [#allocation10], 64, 64, 4
        $region24: #{tpu_custom_call.1} parent=11 // pred_fallthru
          _
        // Predicated region
        $region25: #{tpu_custom_call.1} parent=11 // pred_check
          %p350 = pneg %p167
        $region26: #{tpu_custom_call.1} parent=11 // pred_check_branch
          %352 = sbr.rel (%p350) target = $region28
        $region27: #{tpu_custom_call.1} parent=11 // pred_region
          %s354 = ssub.s32 16, 16
          %355 = vsyncadd [#allocation13], %s354
          %s357 = sshll.u32 [#allocation12], 4
          %s358 = int_to_ptr.vmem [resolvable:$true] %s357
          %360 = dma.hbm_to_vmem [thread:$0]  %s5, 16, %s358, [#allocation13]
        $region28: #{tpu_custom_call.1} parent=11 // pred_fallthru
          _
        // Predicated region
        $region29: #{tpu_custom_call.1} parent=11 // pred_check
          %p361 = pneg %p188
        $region30: #{tpu_custom_call.1} parent=11 // pred_check_branch
          %363 = sbr.rel (%p361) target = $region32
        $region31: #{tpu_custom_call.1} parent=11 // pred_region
          %s365 = ssub.s32 256, 256
          %366 = vsyncadd [#allocation13], %s365
          %s367 = sshll.u32 [#allocation14], 4
          %s368 = int_to_ptr.vmem [resolvable:$true] %s367
          %373 = dma.hbm_to_vmem [thread:$0]  %s6, 256, %s368, [#allocation13], 64, 64, 4
        $region32: #{tpu_custom_call.1} parent=11 // pred_fallthru
          _
        // Predicated region
        $region33: #{tpu_custom_call.1} parent=11 // pred_check
          %p374 = pneg %p209
        $region34: #{tpu_custom_call.1} parent=11 // pred_check_branch
          %376 = sbr.rel (%p374) target = $region36
        $region35: #{tpu_custom_call.1} parent=11 // pred_region
          %s378 = ssub.s32 16, 16
          %379 = vsyncadd [#allocation16], %s378
          %s381 = sshll.u32 [#allocation15], 4
          %s382 = int_to_ptr.vmem [resolvable:$true] %s381
          %384 = dma.hbm_to_vmem [thread:$0]  %s7, 16, %s382, [#allocation16]
        $region36: #{tpu_custom_call.1} parent=11 // pred_fallthru
          _
        // Predicated region
        $region37: #{tpu_custom_call.1} parent=11 // pred_check
          %p385 = pneg %p230
        $region38: #{tpu_custom_call.1} parent=11 // pred_check_branch
          %387 = sbr.rel (%p385) target = $region40
        $region39: #{tpu_custom_call.1} parent=11 // pred_region
          %s389 = ssub.s32 512, 512
          %390 = vsyncadd [#allocation16], %s389
          %s391 = sshll.u32 [#allocation17], 4
          %s392 = int_to_ptr.vmem [resolvable:$true] %s391
          %397 = dma.hbm_to_vmem [thread:$0]  %s8, 512, %s392, [#allocation16], 64, 64, 4
        $region40: #{tpu_custom_call.1} parent=11 // pred_fallthru
          _
        // Predicated region
        $region41: #{tpu_custom_call.1} parent=11 // pred_check
          %p398 = pneg %p251
        $region42: #{tpu_custom_call.1} parent=11 // pred_check_branch
          %400 = sbr.rel (%p398) target = $region44
        $region43: #{tpu_custom_call.1} parent=11 // pred_region
          %s402 = ssub.s32 16, 16
          %403 = vsyncadd [#allocation19], %s402
          %s405 = sshll.u32 [#allocation18], 4
          %s406 = int_to_ptr.vmem [resolvable:$true] %s405
          %408 = dma.hbm_to_vmem [thread:$0]  %s9, 16, %s406, [#allocation19]
        $region44: #{tpu_custom_call.1} parent=11 // pred_fallthru
          _
        // Predicated region
        $region45: #{tpu_custom_call.1} parent=11 // pred_check
          %p409 = pneg %p272
        $region46: #{tpu_custom_call.1} parent=11 // pred_check_branch
          %411 = sbr.rel (%p409) target = $region48
        $region47: #{tpu_custom_call.1} parent=11 // pred_region
          %s413 = ssub.s32 16, 16
          %414 = vsyncadd [#allocation5], %s413
          %417 = dma.hbm_to_smem %s10, 16, [#allocation20], [#allocation5]
        $region48: #{tpu_custom_call.1} parent=11 // pred_fallthru
          _
      $region12: #{tpu_custom_call.1} parent=5 // pred_fallthru
        _
      %p418 = scmp.lt.s32.totalorder %s31, 2
      // Predicated region
      $region49: #{tpu_custom_call.1} parent=5 // pred_check
        %p419 = pneg %p418
      $region50: #{tpu_custom_call.1} parent=5 // pred_check_branch
        %421 = sbr.rel (%p419) target = $region52
      $region51: #{tpu_custom_call.1} parent=5 // pred_region
        // Predicated region
        $region53: #{tpu_custom_call.1} parent=51 // pred_check
          %p422 = pneg %p51
        $region54: #{tpu_custom_call.1} parent=51 // pred_check_branch
          %424 = sbr.rel (%p422) target = $region56
        $region55: #{tpu_custom_call.1} parent=51 // pred_region
          %s425 = sand.u32 %s41, 1
          %s426 = scalar_lea.sflag [#allocation3], %s425
          %s427 = sand.u32 %s41, 1
          %s428 = smul.addr %s427, 8
          %s429 = scalar_lea.vmem [#allocation2], %s428
          %s431 = ssub.s32 128, 128
          %432 = vsyncadd %s426, %s431
          %s433 = smul.addr %s31, 128
          %s434 = scalar_lea.hbm %s0, %s433
          %s436 = sshll.u32 %s429, 4
          %s437 = int_to_ptr.vmem [resolvable:$true] %s436
          %439 = dma.hbm_to_vmem [thread:$0]  %s434, 128, %s437, %s426
        $region56: #{tpu_custom_call.1} parent=51 // pred_fallthru
          _
        // Predicated region
        $region57: #{tpu_custom_call.1} parent=51 // pred_check
          %p440 = pneg %p77
        $region58: #{tpu_custom_call.1} parent=51 // pred_check_branch
          %442 = sbr.rel (%p440) target = $region60
        $region59: #{tpu_custom_call.1} parent=51 // pred_region
          %s443 = sand.u32 %s31, 1
          %s444 = scalar_lea.sflag [#allocation7], %s443
          %s445 = sand.u32 %s67, 1
          %s446 = smul.addr %s445, 2
          %s447 = scalar_lea.vmem [#allocation6], %s446
          %s449 = ssub.s32 32, 32
          %450 = vsyncadd %s444, %s449
          %s451 = smul.addr %s31, 32
          %s452 = scalar_lea.hbm %s1, %s451
          %s454 = sshll.u32 %s447, 4
          %s455 = int_to_ptr.vmem [resolvable:$true] %s454
          %457 = dma.hbm_to_vmem [thread:$0]  %s452, 32, %s455, %s444
        $region60: #{tpu_custom_call.1} parent=51 // pred_fallthru
          _
      $region52: #{tpu_custom_call.1} parent=5 // pred_fallthru
        _
      %p458 = scmp.le.s32.totalorder 1, %s31
      %p459 = scmp.lt.s32.totalorder %s31, 3
      %p460 = pnand %p458, %p459
      %p461 = pneg %p460
      // Predicated region
      $region61: #{tpu_custom_call.1} parent=5 // pred_check
        _
      $region62: #{tpu_custom_call.1} parent=5 // pred_check_branch
        %463 = sbr.rel (%p460) target = $region64
      $region63: #{tpu_custom_call.1} parent=5 // pred_region
        %s464 = ssub.s32 %s31, 1
        %s465 = sand.u32 %s44, 1
        %s466 = scalar_lea.sflag [#allocation3], %s465
        %s467 = sand.u32 %s44, 1
        %s468 = smul.addr %s467, 8
        %s469 = scalar_lea.vmem [#allocation2], %s468
        // Predicated region
        $region65: #{tpu_custom_call.1} parent=63 // pred_check
          %p470 = pneg %p57
        $region66: #{tpu_custom_call.1} parent=63 // pred_check_branch
          %472 = sbr.rel (%p470) target = $region68
        $region67: #{tpu_custom_call.1} parent=63 // pred_region
          %473 = dma.done %s466, 128
        $region68: #{tpu_custom_call.1} parent=63 // pred_fallthru
          _
        %s474 = sand.u32 %s36, 1
        %s475 = scalar_lea.sflag [#allocation7], %s474
        %s476 = sand.u32 %s70, 1
        %s477 = smul.addr %s476, 2
        %s478 = scalar_lea.vmem [#allocation6], %s477
        // Predicated region
        $region69: #{tpu_custom_call.1} parent=63 // pred_check
          %p479 = pneg %p83
        $region70: #{tpu_custom_call.1} parent=63 // pred_check_branch
          %481 = sbr.rel (%p479) target = $region72
        $region71: #{tpu_custom_call.1} parent=63 // pred_region
          %482 = dma.done %s475, 32
        $region72: #{tpu_custom_call.1} parent=63 // pred_fallthru
          _
        // Predicated region
        $region73: #{tpu_custom_call.1} parent=63 // pred_check
          %p483 = pneg %p104
        $region74: #{tpu_custom_call.1} parent=63 // pred_check_branch
          %485 = sbr.rel (%p483) target = $region76
        $region75: #{tpu_custom_call.1} parent=63 // pred_region
          %486 = dma.done [#allocation7], 256
        $region76: #{tpu_custom_call.1} parent=63 // pred_fallthru
          _
        // Predicated region
        $region77: #{tpu_custom_call.1} parent=63 // pred_check
          %p487 = pneg %p125
        $region78: #{tpu_custom_call.1} parent=63 // pred_check_branch
          %489 = sbr.rel (%p487) target = $region80
        $region79: #{tpu_custom_call.1} parent=63 // pred_region
          %490 = dma.done [#allocation10], 16
        $region80: #{tpu_custom_call.1} parent=63 // pred_fallthru
          _
        // Predicated region
        $region81: #{tpu_custom_call.1} parent=63 // pred_check
          %p491 = pneg %p146
        $region82: #{tpu_custom_call.1} parent=63 // pred_check_branch
          %493 = sbr.rel (%p491) target = $region84
        $region83: #{tpu_custom_call.1} parent=63 // pred_region
          %494 = dma.done [#allocation10], 256
        $region84: #{tpu_custom_call.1} parent=63 // pred_fallthru
          _
        // Predicated region
        $region85: #{tpu_custom_call.1} parent=63 // pred_check
          %p495 = pneg %p167
        $region86: #{tpu_custom_call.1} parent=63 // pred_check_branch
          %497 = sbr.rel (%p495) target = $region88
        $region87: #{tpu_custom_call.1} parent=63 // pred_region
          %498 = dma.done [#allocation13], 16
        $region88: #{tpu_custom_call.1} parent=63 // pred_fallthru
          _
        // Predicated region
        $region89: #{tpu_custom_call.1} parent=63 // pred_check
          %p499 = pneg %p188
        $region90: #{tpu_custom_call.1} parent=63 // pred_check_branch
          %501 = sbr.rel (%p499) target = $region92
        $region91: #{tpu_custom_call.1} parent=63 // pred_region
          %502 = dma.done [#allocation13], 256
        $region92: #{tpu_custom_call.1} parent=63 // pred_fallthru
          _
        // Predicated region
        $region93: #{tpu_custom_call.1} parent=63 // pred_check
          %p503 = pneg %p209
        $region94: #{tpu_custom_call.1} parent=63 // pred_check_branch
          %505 = sbr.rel (%p503) target = $region96
        $region95: #{tpu_custom_call.1} parent=63 // pred_region
          %506 = dma.done [#allocation16], 16
        $region96: #{tpu_custom_call.1} parent=63 // pred_fallthru
          _
        // Predicated region
        $region97: #{tpu_custom_call.1} parent=63 // pred_check
          %p507 = pneg %p230
        $region98: #{tpu_custom_call.1} parent=63 // pred_check_branch
          %509 = sbr.rel (%p507) target = $region100
        $region99: #{tpu_custom_call.1} parent=63 // pred_region
          %510 = dma.done [#allocation16], 512
        $region100: #{tpu_custom_call.1} parent=63 // pred_fallthru
          _
        // Predicated region
        $region101: #{tpu_custom_call.1} parent=63 // pred_check
          %p511 = pneg %p251
        $region102: #{tpu_custom_call.1} parent=63 // pred_check_branch
          %513 = sbr.rel (%p511) target = $region104
        $region103: #{tpu_custom_call.1} parent=63 // pred_region
          %514 = dma.done [#allocation19], 16
        $region104: #{tpu_custom_call.1} parent=63 // pred_fallthru
          _
        // Predicated region
        $region105: #{tpu_custom_call.1} parent=63 // pred_check
          %p515 = pneg %p272
        $region106: #{tpu_custom_call.1} parent=63 // pred_check_branch
          %517 = sbr.rel (%p515) target = $region108
        $region107: #{tpu_custom_call.1} parent=63 // pred_region
          %518 = dma.done [#allocation5], 16
        $region108: #{tpu_custom_call.1} parent=63 // pred_fallthru
          _
        %519 = sfence
        %s520 = sand.u32 %s44, 1
        %s521 = scalar_lea.sflag [#allocation3], %s520
        %s522 = sand.u32 %s44, 1
        %s523 = smul.addr %s522, 8
        %s524 = scalar_lea.vmem [#allocation2], %s523
        %p525 = pneg %p57
        %p526 = pneg %p54
        %s527 = sand.u32 %s36, 1
        %s528 = scalar_lea.sflag [#allocation7], %s527
        %s529 = sand.u32 %s70, 1
        %s530 = smul.addr %s529, 2
        %s531 = scalar_lea.vmem [#allocation6], %s530
        %p532 = pneg %p83
        %p533 = pneg %p80
        %p534 = pneg %p104
        %p535 = pneg %p101
        %p536 = pneg %p125
        %p537 = pneg %p122
        %p538 = pneg %p146
        %p539 = pneg %p143
        %p540 = pneg %p167
        %p541 = pneg %p164
        %p542 = pneg %p188
        %p543 = pneg %p185
        %p544 = pneg %p209
        %p545 = pneg %p206
        %p546 = pneg %p230
        %p547 = pneg %p227
        %p548 = pneg %p251
        %p549 = pneg %p248
        %p550 = pneg %p272
        %p551 = pneg %p269
        %p552 = pneg %p298
        %p553 = pneg %p295
        %s554 = sand.u32 %s285, 1
        %s555 = scalar_lea.sflag [#allocation4], %s554
        %s556 = sand.u32 %s285, 1
        %s557 = smul.addr %s556, 8
        %s558 = scalar_lea.vmem [#allocation21], %s557
        %v560 = vld [vmem:[%s469] sm:$0xff]
        %v561 = vld [vmem:[%s478] sm:$0x3]
        %v562 = vunpack.c.0.s8 %v561
        %v563 = vcvt.s32.f32 %v562
        %vm564 = vcmp.eq.f32.partialorder %v563, 0.0
        %s565 = sld [smem:[#allocation20]]
        %s566 = sld [smem:[#allocation20 + $0x1]]
        %vm567 = vcmask 261120
        %v568 = vsel %vm567, %v560, 0.0
        %569 = vadd.xlane.f32.xlu0 %v568
        %v570 = vpop.xlane.xlu0 %569
        %v571 = vrcp.pop 32.0
        %v572 = vmul.f32 %v570, %v571
        %v573 = vsub.f32 %v560, %v572
        %v574 = vmul.f32 %v573, %v573
        %v575 = vsel %vm567, %v574, 0.0
        %576 = vadd.xlane.f32.xlu0 %v575
        %v577 = vpop.xlane.xlu0 %576
        %v578 = vrcp.pop 31.0
        %v579 = vmul.f32 %v577, %v578
        %v580 = vrsqrt.pop %v579
        %v581 = vmul.f32 %v579, %v580
        %vm582 = vcmp.eq.f32.partialorder %v579, inf
        %v583 = vsel %vm582, %v579, %v581
        %vm584 = vcmp.eq.f32.partialorder %v579, 0.0
        %v585 = vand.u32 %v579, 2147483648
        %v586 = vsel %vm584, %v585, %v583
        %v587 = vstv %s565
        %v588 = vmul.f32 %v587, %v573
        %v589 = vadd.f32 %v586, 1e-06
        %v590 = vrcp.pop %v589
        %v591 = vmul.f32 %v588, %v590
        %v592 = vstv %s566
        %v593 = vadd.f32 %v591, %v592
        %v594 = vpack.c.bf16 %v593, %v593
        %v595 = vld [vmem:[#allocation8] sm:$0xf]
        %v596 = vld [vmem:[#allocation8 + $0x4] sm:$0xf]
        %v597 = vld [vmem:[#allocation8 + $0x8] sm:$0xf]
        %v598 = vld [vmem:[#allocation8 + $0xc] sm:$0xf]
        %v599 = vld [vmem:[#allocation9] sm:$0x1]
        %v601 = vlaneseq
        %v602 = vshrl.u32 %v601, 7
        %v603 = vsub.s32 0, %v602
        %v604 = vrot.slane %v599, %v603
        %v610 = vunpack.c.l.b16 %v595
        %v611 = vunpack.c.l.b16 %v596
        %v612 = vunpack.c.l.b16 %v597
        %v613 = vunpack.c.l.b16 %v598
        %v614 = vpack.c.b16 %v611, %v610
        %v615 = vpack.c.b16 %v613, %v612
        %v619 = vsel %vm567, %v594, 0
        %621 = vmatprep.subr.bf16.mxu0 0
        %622 = vmatpush1.bf16.msra.mxu0 %v614
        %623 = vmatprep.subr.bf16.mxu0 0
        %624 = vmatpush1.bf16.msra.mxu0 %v615
        %625 = vmatprep.subr.bf16.mxu0 0
        %626 = vmatpush1.bf16.msra.mxu0 0
        %627 = vmatprep.subr.bf16.mxu0 0
        %628 = vmatpush1.bf16.msra.mxu0 0
        %629 = vmatprep.subr.bf16.mxu0 0
        %630 = vmatpush1.bf16.msra.mxu0 0
        %631 = vmatprep.subr.bf16.mxu0 0
        %632 = vmatpush1.bf16.msra.mxu0 0
        %633 = vmatprep.subr.bf16.mxu0 0
        %634 = vmatpush1.bf16.msra.mxu0 0
        %635 = vmatprep.subr.bf16.mxu0 0
        %636 = vmatpush1.bf16.msra.mxu0 0
        %637 = vmatprep.subr.bf16.mxu0 0
        %638 = vmatpush1.bf16.msra.mxu0 0
        %639 = vmatprep.subr.bf16.mxu0 0
        %640 = vmatpush1.bf16.msra.mxu0 0
        %641 = vmatprep.subr.bf16.mxu0 0
        %642 = vmatpush1.bf16.msra.mxu0 0
        %643 = vmatprep.subr.bf16.mxu0 0
        %644 = vmatpush1.bf16.msra.mxu0 0
        %645 = vmatprep.subr.bf16.mxu0 0
        %646 = vmatpush1.bf16.msra.mxu0 0
        %647 = vmatprep.subr.bf16.mxu0 0
        %648 = vmatpush1.bf16.msra.mxu0 0
        %649 = vmatprep.subr.bf16.mxu0 0
        %650 = vmatpush1.bf16.msra.mxu0 0
        %651 = vmatprep.subr.bf16.mxu0 0
        %652 = vmatpush1.bf16.msra.mxu0 0
        %653 = vmatprep.mubr.bf16.mxu0 0
        %654 = vmatmul.mubr.bf16.gmra.mrb[0].mxu0 %v619
        %v655 = vpop.f32.mrb[0].mxu0
        %v656 = vadd.f32 %v604, %v655
        %v657 = vpop.f32.mrb[0].mxu0
        %v658 = vpop.f32.mrb[0].mxu0
        %v659 = vpop.f32.mrb[0].mxu0
        %660 = vdwg.mxu0
        %662 = vrot.lane.b32.xlu0 %v656, 120
        %v663 = vpop.permute.xlu0 %662
        %665 = vrot.lane.b32.xlu0 %v656, 112
        %v666 = vpop.permute.xlu0 %665
        %668 = vrot.lane.b32.xlu0 %v656, 104
        %v669 = vpop.permute.xlu0 %668
        %v671 = vpack.c.bf16 %v656, %v656
        %v672 = vpack.c.bf16 %v663, %v663
        %v673 = vpack.c.bf16 %v666, %v666
        %v674 = vpack.c.bf16 %v669, %v669
        %676 = vrot.lane.b32.xlu0 %v671, 96
        %v677 = vpop.permute.xlu0 %676
        %vm678 = vcmask 64512
        %v680 = vsel %vm678, %v671, 0
        %v683 = vsel %vm678, %v677, 0
        %685 = vmatprep.subr.bf16.mxu0 0
        %686 = vmatpush1.bf16.xpose.msra.mxu0 %v683
        %687 = vmatprep.subr.bf16.mxu0 0
        %688 = vmatpush1.bf16.xpose.msra.mxu0 0
        %689 = vmatprep.subr.bf16.mxu0 0
        %690 = vmatpush1.bf16.xpose.msra.mxu0 0
        %691 = vmatprep.subr.bf16.mxu0 0
        %692 = vmatpush1.bf16.xpose.msra.mxu0 0
        %693 = vmatprep.subr.bf16.mxu0 0
        %694 = vmatpush1.bf16.xpose.msra.mxu0 0
        %695 = vmatprep.subr.bf16.mxu0 0
        %696 = vmatpush1.bf16.xpose.msra.mxu0 0
        %697 = vmatprep.subr.bf16.mxu0 0
        %698 = vmatpush1.bf16.xpose.msra.mxu0 0
        %699 = vmatprep.subr.bf16.mxu0 0
        %700 = vmatpush1.bf16.xpose.msra.mxu0 0
        %701 = vmatprep.subr.bf16.mxu0 0
        %702 = vmatpush1.bf16.xpose.msra.mxu0 0
        %703 = vmatprep.subr.bf16.mxu0 0
        %704 = vmatpush1.bf16.xpose.msra.mxu0 0
        %705 = vmatprep.subr.bf16.mxu0 0
        %706 = vmatpush1.bf16.xpose.msra.mxu0 0
        %707 = vmatprep.subr.bf16.mxu0 0
        %708 = vmatpush1.bf16.xpose.msra.mxu0 0
        %709 = vmatprep.subr.bf16.mxu0 0
        %710 = vmatpush1.bf16.xpose.msra.mxu0 0
        %711 = vmatprep.subr.bf16.mxu0 0
        %712 = vmatpush1.bf16.xpose.msra.mxu0 0
        %713 = vmatprep.subr.bf16.mxu0 0
        %714 = vmatpush1.bf16.xpose.msra.mxu0 0
        %715 = vmatprep.subr.bf16.mxu0 0
        %716 = vmatpush1.bf16.xpose.msra.mxu0 0
        %717 = vmatprep.mubr.bf16.mxu0 0
        %718 = vmatmul.mubr.bf16.gmra.mrb[0].mxu0 %v680
        %v719 = vpop.f32.mrb[0].mxu0
        %v720 = vadd.f32 0.0, %v719
        %v721 = vpop.f32.mrb[0].mxu0
        %v722 = vpop.f32.mrb[0].mxu0
        %v723 = vpop.f32.mrb[0].mxu0
        %724 = vdwg.mxu0
        %726 = vrot.lane.b32.xlu0 %v672, 96
        %v727 = vpop.permute.xlu0 %726
        %v729 = vsel %vm678, %v672, 0
        %v732 = vsel %vm678, %v727, 0
        %734 = vmatprep.subr.bf16.mxu0 0
        %735 = vmatpush1.bf16.xpose.msra.mxu0 %v732
        %736 = vmatprep.subr.bf16.mxu0 0
        %737 = vmatpush1.bf16.xpose.msra.mxu0 0
        %738 = vmatprep.subr.bf16.mxu0 0
        %739 = vmatpush1.bf16.xpose.msra.mxu0 0
        %740 = vmatprep.subr.bf16.mxu0 0
        %741 = vmatpush1.bf16.xpose.msra.mxu0 0
        %742 = vmatprep.subr.bf16.mxu0 0
        %743 = vmatpush1.bf16.xpose.msra.mxu0 0
        %744 = vmatprep.subr.bf16.mxu0 0
        %745 = vmatpush1.bf16.xpose.msra.mxu0 0
        %746 = vmatprep.subr.bf16.mxu0 0
        %747 = vmatpush1.bf16.xpose.msra.mxu0 0
        %748 = vmatprep.subr.bf16.mxu0 0
        %749 = vmatpush1.bf16.xpose.msra.mxu0 0
        %750 = vmatprep.subr.bf16.mxu0 0
        %751 = vmatpush1.bf16.xpose.msra.mxu0 0
        %752 = vmatprep.subr.bf16.mxu0 0
        %753 = vmatpush1.bf16.xpose.msra.mxu0 0
        %754 = vmatprep.subr.bf16.mxu0 0
        %755 = vmatpush1.bf16.xpose.msra.mxu0 0
        %756 = vmatprep.subr.bf16.mxu0 0
        %757 = vmatpush1.bf16.xpose.msra.mxu0 0
        %758 = vmatprep.subr.bf16.mxu0 0
        %759 = vmatpush1.bf16.xpose.msra.mxu0 0
        %760 = vmatprep.subr.bf16.mxu0 0
        %761 = vmatpush1.bf16.xpose.msra.mxu0 0
        %762 = vmatprep.subr.bf16.mxu0 0
        %763 = vmatpush1.bf16.xpose.msra.mxu0 0
        %764 = vmatprep.subr.bf16.mxu0 0
        %765 = vmatpush1.bf16.xpose.msra.mxu0 0
        %766 = vmatprep.mubr.bf16.mxu0 0
        %767 = vmatmul.mubr.bf16.gmra.mrb[0].mxu0 %v729
        %v768 = vpop.f32.mrb[0].mxu0
        %v769 = vadd.f32 0.0, %v768
        %v770 = vpop.f32.mrb[0].mxu0
        %v771 = vpop.f32.mrb[0].mxu0
        %v772 = vpop.f32.mrb[0].mxu0
        %773 = vdwg.mxu0
        %775 = vrot.lane.b32.xlu0 %v673, 96
        %v776 = vpop.permute.xlu0 %775
        %v778 = vsel %vm678, %v673, 0
        %v781 = vsel %vm678, %v776, 0
        %783 = vmatprep.subr.bf16.mxu0 0
        %784 = vmatpush1.bf16.xpose.msra.mxu0 %v781
        %785 = vmatprep.subr.bf16.mxu0 0
        %786 = vmatpush1.bf16.xpose.msra.mxu0 0
        %787 = vmatprep.subr.bf16.mxu0 0
        %788 = vmatpush1.bf16.xpose.msra.mxu0 0
        %789 = vmatprep.subr.bf16.mxu0 0
        %790 = vmatpush1.bf16.xpose.msra.mxu0 0
        %791 = vmatprep.subr.bf16.mxu0 0
        %792 = vmatpush1.bf16.xpose.msra.mxu0 0
        %793 = vmatprep.subr.bf16.mxu0 0
        %794 = vmatpush1.bf16.xpose.msra.mxu0 0
        %795 = vmatprep.subr.bf16.mxu0 0
        %796 = vmatpush1.bf16.xpose.msra.mxu0 0
        %797 = vmatprep.subr.bf16.mxu0 0
        %798 = vmatpush1.bf16.xpose.msra.mxu0 0
        %799 = vmatprep.subr.bf16.mxu0 0
        %800 = vmatpush1.bf16.xpose.msra.mxu0 0
        %801 = vmatprep.subr.bf16.mxu0 0
        %802 = vmatpush1.bf16.xpose.msra.mxu0 0
        %803 = vmatprep.subr.bf16.mxu0 0
        %804 = vmatpush1.bf16.xpose.msra.mxu0 0
        %805 = vmatprep.subr.bf16.mxu0 0
        %806 = vmatpush1.bf16.xpose.msra.mxu0 0
        %807 = vmatprep.subr.bf16.mxu0 0
        %808 = vmatpush1.bf16.xpose.msra.mxu0 0
        %809 = vmatprep.subr.bf16.mxu0 0
        %810 = vmatpush1.bf16.xpose.msra.mxu0 0
        %811 = vmatprep.subr.bf16.mxu0 0
        %812 = vmatpush1.bf16.xpose.msra.mxu0 0
        %813 = vmatprep.subr.bf16.mxu0 0
        %814 = vmatpush1.bf16.xpose.msra.mxu0 0
        %815 = vmatprep.mubr.bf16.mxu0 0
        %816 = vmatmul.mubr.bf16.gmra.mrb[0].mxu0 %v778
        %v817 = vpop.f32.mrb[0].mxu0
        %v818 = vadd.f32 0.0, %v817
        %v819 = vpop.f32.mrb[0].mxu0
        %v820 = vpop.f32.mrb[0].mxu0
        %v821 = vpop.f32.mrb[0].mxu0
        %822 = vdwg.mxu0
        %824 = vrot.lane.b32.xlu0 %v674, 96
        %v825 = vpop.permute.xlu0 %824
        %v827 = vsel %vm678, %v674, 0
        %v830 = vsel %vm678, %v825, 0
        %832 = vmatprep.subr.bf16.mxu0 0
        %833 = vmatpush1.bf16.xpose.msra.mxu0 %v830
        %834 = vmatprep.subr.bf16.mxu0 0
        %835 = vmatpush1.bf16.xpose.msra.mxu0 0
        %836 = vmatprep.subr.bf16.mxu0 0
        %837 = vmatpush1.bf16.xpose.msra.mxu0 0
        %838 = vmatprep.subr.bf16.mxu0 0
        %839 = vmatpush1.bf16.xpose.msra.mxu0 0
        %840 = vmatprep.subr.bf16.mxu0 0
        %841 = vmatpush1.bf16.xpose.msra.mxu0 0
        %842 = vmatprep.subr.bf16.mxu0 0
        %843 = vmatpush1.bf16.xpose.msra.mxu0 0
        %844 = vmatprep.subr.bf16.mxu0 0
        %845 = vmatpush1.bf16.xpose.msra.mxu0 0
        %846 = vmatprep.subr.bf16.mxu0 0
        %847 = vmatpush1.bf16.xpose.msra.mxu0 0
        %848 = vmatprep.subr.bf16.mxu0 0
        %849 = vmatpush1.bf16.xpose.msra.mxu0 0
        %850 = vmatprep.subr.bf16.mxu0 0
        %851 = vmatpush1.bf16.xpose.msra.mxu0 0
        %852 = vmatprep.subr.bf16.mxu0 0
        %853 = vmatpush1.bf16.xpose.msra.mxu0 0
        %854 = vmatprep.subr.bf16.mxu0 0
        %855 = vmatpush1.bf16.xpose.msra.mxu0 0
        %856 = vmatprep.subr.bf16.mxu0 0
        %857 = vmatpush1.bf16.xpose.msra.mxu0 0
        %858 = vmatprep.subr.bf16.mxu0 0
        %859 = vmatpush1.bf16.xpose.msra.mxu0 0
        %860 = vmatprep.subr.bf16.mxu0 0
        %861 = vmatpush1.bf16.xpose.msra.mxu0 0
        %862 = vmatprep.subr.bf16.mxu0 0
        %863 = vmatpush1.bf16.xpose.msra.mxu0 0
        %864 = vmatprep.mubr.bf16.mxu0 0
        %865 = vmatmul.mubr.bf16.gmra.mrb[0].mxu0 %v827
        %v866 = vpop.f32.mrb[0].mxu0
        %v867 = vadd.f32 0.0, %v866
        %v868 = vpop.f32.mrb[0].mxu0
        %v869 = vpop.f32.mrb[0].mxu0
        %v870 = vpop.f32.mrb[0].mxu0
        %871 = vdwg.mxu0
        %v872 = vsel %vm564, 1, 0
        %vm873 = vcmp.eq.s32.totalorder %v872, 1
        %v874 = vsel %vm873, -1e+09, %v720
        %v875 = vsel %vm873, -1e+09, %v769
        %v876 = vsel %vm873, -1e+09, %v818
        %v877 = vsel %vm873, -1e+09, %v867
        %v878 = vsel %vm678, %v874, -inf
        %879 = vmax.xlane.f32.xlu0 %v878
        %v880 = vpop.xlane.xlu0 %879
        %v881 = vsel %vm678, %v875, -inf
        %882 = vmax.xlane.f32.xlu0 %v881
        %v883 = vpop.xlane.xlu0 %882
        %v884 = vsel %vm678, %v876, -inf
        %885 = vmax.xlane.f32.xlu0 %v884
        %v886 = vpop.xlane.xlu0 %885
        %v887 = vsel %vm678, %v877, -inf
        %888 = vmax.xlane.f32.xlu0 %v887
        %v889 = vpop.xlane.xlu0 %888
        %v890 = vsub.f32 %v874, %v880
        %v891 = vsub.f32 %v875, %v883
        %v892 = vsub.f32 %v876, %v886
        %v893 = vsub.f32 %v877, %v889
        %v894 = vmul.f32 %v890, 1.442695
        %v895 = vpow.pop %v894
        %v896 = vmul.f32 %v891, 1.442695
        %v897 = vpow.pop %v896
        %v898 = vmul.f32 %v892, 1.442695
        %v899 = vpow.pop %v898
        %v900 = vmul.f32 %v893, 1.442695
        %v901 = vpow.pop %v900
        %v902 = vsel %vm678, %v895, 0.0
        %903 = vadd.xlane.f32.xlu0 %v902
        %v904 = vpop.xlane.xlu0 %903
        %v905 = vsel %vm678, %v897, 0.0
        %906 = vadd.xlane.f32.xlu0 %v905
        %v907 = vpop.xlane.xlu0 %906
        %v908 = vsel %vm678, %v899, 0.0
        %909 = vadd.xlane.f32.xlu0 %v908
        %v910 = vpop.xlane.xlu0 %909
        %v911 = vsel %vm678, %v901, 0.0
        %912 = vadd.xlane.f32.xlu0 %v911
        %v913 = vpop.xlane.xlu0 %912
        %v914 = vrcp.pop %v904
        %v915 = vrcp.pop %v907
        %v916 = vrcp.pop %v910
        %v917 = vrcp.pop %v913
        %v918 = vmul.f32 %v895, %v914
        %v919 = vmul.f32 %v897, %v915
        %v920 = vmul.f32 %v899, %v916
        %v921 = vmul.f32 %v901, %v917
        %v922 = vpack.c.bf16 %v918, %v918
        %v923 = vpack.c.bf16 %v919, %v919
        %v924 = vpack.c.bf16 %v920, %v920
        %v925 = vpack.c.bf16 %v921, %v921
        %926 = vrot.lane.b32.xlu0 %v671, 64
        %v927 = vpop.permute.xlu0 %926
        %v929 = vsel %vm678, %v922, 0
        %vm931 = vcmask 1043456
        %v933 = vsel %vm931, %v927, 0
        %935 = vmatprep.subr.bf16.mxu0 0
        %936 = vmatpush1.bf16.msra.mxu0 %v933
        %937 = vmatprep.subr.bf16.mxu0 0
        %938 = vmatpush1.bf16.msra.mxu0 0
        %939 = vmatprep.subr.bf16.mxu0 0
        %940 = vmatpush1.bf16.msra.mxu0 0
        %941 = vmatprep.subr.bf16.mxu0 0
        %942 = vmatpush1.bf16.msra.mxu0 0
        %943 = vmatprep.subr.bf16.mxu0 0
        %944 = vmatpush1.bf16.msra.mxu0 0
        %945 = vmatprep.subr.bf16.mxu0 0
        %946 = vmatpush1.bf16.msra.mxu0 0
        %947 = vmatprep.subr.bf16.mxu0 0
        %948 = vmatpush1.bf16.msra.mxu0 0
        %949 = vmatprep.subr.bf16.mxu0 0
        %950 = vmatpush1.bf16.msra.mxu0 0
        %951 = vmatprep.subr.bf16.mxu0 0
        %952 = vmatpush1.bf16.msra.mxu0 0
        %953 = vmatprep.subr.bf16.mxu0 0
        %954 = vmatpush1.bf16.msra.mxu0 0
        %955 = vmatprep.subr.bf16.mxu0 0
        %956 = vmatpush1.bf16.msra.mxu0 0
        %957 = vmatprep.subr.bf16.mxu0 0
        %958 = vmatpush1.bf16.msra.mxu0 0
        %959 = vmatprep.subr.bf16.mxu0 0
        %960 = vmatpush1.bf16.msra.mxu0 0
        %961 = vmatprep.subr.bf16.mxu0 0
        %962 = vmatpush1.bf16.msra.mxu0 0
        %963 = vmatprep.subr.bf16.mxu0 0
        %964 = vmatpush1.bf16.msra.mxu0 0
        %965 = vmatprep.subr.bf16.mxu0 0
        %966 = vmatpush1.bf16.msra.mxu0 0
        %967 = vmatprep.mubr.bf16.mxu0 0
        %968 = vmatmul.mubr.bf16.gmra.mrb[0].mxu0 %v929
        %v969 = vpop.f32.mrb[0].mxu0
        %v970 = vadd.f32 0.0, %v969
        %v971 = vpop.f32.mrb[0].mxu0
        %v972 = vpop.f32.mrb[0].mxu0
        %v973 = vpop.f32.mrb[0].mxu0
        %974 = vdwg.mxu0
        %975 = vrot.lane.b32.xlu0 %v672, 64
        %v976 = vpop.permute.xlu0 %975
        %v978 = vsel %vm678, %v923, 0
        %v981 = vsel %vm931, %v976, 0
        %983 = vmatprep.subr.bf16.mxu0 0
        %984 = vmatpush1.bf16.msra.mxu0 %v981
        %985 = vmatprep.subr.bf16.mxu0 0
        %986 = vmatpush1.bf16.msra.mxu0 0
        %987 = vmatprep.subr.bf16.mxu0 0
        %988 = vmatpush1.bf16.msra.mxu0 0
        %989 = vmatprep.subr.bf16.mxu0 0
        %990 = vmatpush1.bf16.msra.mxu0 0
        %991 = vmatprep.subr.bf16.mxu0 0
        %992 = vmatpush1.bf16.msra.mxu0 0
        %993 = vmatprep.subr.bf16.mxu0 0
        %994 = vmatpush1.bf16.msra.mxu0 0
        %995 = vmatprep.subr.bf16.mxu0 0
        %996 = vmatpush1.bf16.msra.mxu0 0
        %997 = vmatprep.subr.bf16.mxu0 0
        %998 = vmatpush1.bf16.msra.mxu0 0
        %999 = vmatprep.subr.bf16.mxu0 0
        %1000 = vmatpush1.bf16.msra.mxu0 0
        %1001 = vmatprep.subr.bf16.mxu0 0
        %1002 = vmatpush1.bf16.msra.mxu0 0
        %1003 = vmatprep.subr.bf16.mxu0 0
        %1004 = vmatpush1.bf16.msra.mxu0 0
        %1005 = vmatprep.subr.bf16.mxu0 0
        %1006 = vmatpush1.bf16.msra.mxu0 0
        %1007 = vmatprep.subr.bf16.mxu0 0
        %1008 = vmatpush1.bf16.msra.mxu0 0
        %1009 = vmatprep.subr.bf16.mxu0 0
        %1010 = vmatpush1.bf16.msra.mxu0 0
        %1011 = vmatprep.subr.bf16.mxu0 0
        %1012 = vmatpush1.bf16.msra.mxu0 0
        %1013 = vmatprep.subr.bf16.mxu0 0
        %1014 = vmatpush1.bf16.msra.mxu0 0
        %1015 = vmatprep.mubr.bf16.mxu0 0
        %1016 = vmatmul.mubr.bf16.gmra.mrb[0].mxu0 %v978
        %v1017 = vpop.f32.mrb[0].mxu0
        %v1018 = vadd.f32 0.0, %v1017
        %v1019 = vpop.f32.mrb[0].mxu0
        %v1020 = vpop.f32.mrb[0].mxu0
        %v1021 = vpop.f32.mrb[0].mxu0
        %1022 = vdwg.mxu0
        %1023 = vrot.lane.b32.xlu0 %v673, 64
        %v1024 = vpop.permute.xlu0 %1023
        %v1026 = vsel %vm678, %v924, 0
        %v1029 = vsel %vm931, %v1024, 0
        %1031 = vmatprep.subr.bf16.mxu0 0
        %1032 = vmatpush1.bf16.msra.mxu0 %v1029
        %1033 = vmatprep.subr.bf16.mxu0 0
        %1034 = vmatpush1.bf16.msra.mxu0 0
        %1035 = vmatprep.subr.bf16.mxu0 0
        %1036 = vmatpush1.bf16.msra.mxu0 0
        %1037 = vmatprep.subr.bf16.mxu0 0
        %1038 = vmatpush1.bf16.msra.mxu0 0
        %1039 = vmatprep.subr.bf16.mxu0 0
        %1040 = vmatpush1.bf16.msra.mxu0 0
        %1041 = vmatprep.subr.bf16.mxu0 0
        %1042 = vmatpush1.bf16.msra.mxu0 0
        %1043 = vmatprep.subr.bf16.mxu0 0
        %1044 = vmatpush1.bf16.msra.mxu0 0
        %1045 = vmatprep.subr.bf16.mxu0 0
        %1046 = vmatpush1.bf16.msra.mxu0 0
        %1047 = vmatprep.subr.bf16.mxu0 0
        %1048 = vmatpush1.bf16.msra.mxu0 0
        %1049 = vmatprep.subr.bf16.mxu0 0
        %1050 = vmatpush1.bf16.msra.mxu0 0
        %1051 = vmatprep.subr.bf16.mxu0 0
        %1052 = vmatpush1.bf16.msra.mxu0 0
        %1053 = vmatprep.subr.bf16.mxu0 0
        %1054 = vmatpush1.bf16.msra.mxu0 0
        %1055 = vmatprep.subr.bf16.mxu0 0
        %1056 = vmatpush1.bf16.msra.mxu0 0
        %1057 = vmatprep.subr.bf16.mxu0 0
        %1058 = vmatpush1.bf16.msra.mxu0 0
        %1059 = vmatprep.subr.bf16.mxu0 0
        %1060 = vmatpush1.bf16.msra.mxu0 0
        %1061 = vmatprep.subr.bf16.mxu0 0
        %1062 = vmatpush1.bf16.msra.mxu0 0
        %1063 = vmatprep.mubr.bf16.mxu0 0
        %1064 = vmatmul.mubr.bf16.gmra.mrb[0].mxu0 %v1026
        %v1065 = vpop.f32.mrb[0].mxu0
        %v1066 = vadd.f32 0.0, %v1065
        %v1067 = vpop.f32.mrb[0].mxu0
        %v1068 = vpop.f32.mrb[0].mxu0
        %v1069 = vpop.f32.mrb[0].mxu0
        %1070 = vdwg.mxu0
        %1071 = vrot.lane.b32.xlu0 %v674, 64
        %v1072 = vpop.permute.xlu0 %1071
        %v1074 = vsel %vm678, %v925, 0
        %v1077 = vsel %vm931, %v1072, 0
        %1079 = vmatprep.subr.bf16.mxu0 0
        %1080 = vmatpush1.bf16.msra.mxu0 %v1077
        %1081 = vmatprep.subr.bf16.mxu0 0
        %1082 = vmatpush1.bf16.msra.mxu0 0
        %1083 = vmatprep.subr.bf16.mxu0 0
        %1084 = vmatpush1.bf16.msra.mxu0 0
        %1085 = vmatprep.subr.bf16.mxu0 0
        %1086 = vmatpush1.bf16.msra.mxu0 0
        %1087 = vmatprep.subr.bf16.mxu0 0
        %1088 = vmatpush1.bf16.msra.mxu0 0
        %1089 = vmatprep.subr.bf16.mxu0 0
        %1090 = vmatpush1.bf16.msra.mxu0 0
        %1091 = vmatprep.subr.bf16.mxu0 0
        %1092 = vmatpush1.bf16.msra.mxu0 0
        %1093 = vmatprep.subr.bf16.mxu0 0
        %1094 = vmatpush1.bf16.msra.mxu0 0
        %1095 = vmatprep.subr.bf16.mxu0 0
        %1096 = vmatpush1.bf16.msra.mxu0 0
        %1097 = vmatprep.subr.bf16.mxu0 0
        %1098 = vmatpush1.bf16.msra.mxu0 0
        %1099 = vmatprep.subr.bf16.mxu0 0
        %1100 = vmatpush1.bf16.msra.mxu0 0
        %1101 = vmatprep.subr.bf16.mxu0 0
        %1102 = vmatpush1.bf16.msra.mxu0 0
        %1103 = vmatprep.subr.bf16.mxu0 0
        %1104 = vmatpush1.bf16.msra.mxu0 0
        %1105 = vmatprep.subr.bf16.mxu0 0
        %1106 = vmatpush1.bf16.msra.mxu0 0
        %1107 = vmatprep.subr.bf16.mxu0 0
        %1108 = vmatpush1.bf16.msra.mxu0 0
        %1109 = vmatprep.subr.bf16.mxu0 0
        %1110 = vmatpush1.bf16.msra.mxu0 0
        %1111 = vmatprep.mubr.bf16.mxu0 0
        %1112 = vmatmul.mubr.bf16.gmra.mrb[0].mxu0 %v1074
        %v1113 = vpop.f32.mrb[0].mxu0
        %v1114 = vadd.f32 0.0, %v1113
        %v1115 = vpop.f32.mrb[0].mxu0
        %v1116 = vpop.f32.mrb[0].mxu0
        %v1117 = vpop.f32.mrb[0].mxu0
        %1118 = vdwg.mxu0
        %1120 = vrot.lane.b32.xlu0 %v1018, 8
        %v1121 = vpop.permute.xlu0 %1120
        %1124 = vrot.lane.b32.xlu0 %v1066, 16
        %v1125 = vpop.permute.xlu0 %1124
        %1128 = vrot.lane.b32.xlu0 %v1114, 24
        %v1129 = vpop.permute.xlu0 %1128
        %v1131 = vsel %vm678, %v970, %v1121
        %vm1132 = vcmask 130048
        %v1133 = vsel %vm1132, %v1131, %v1125
        %vm1134 = vcmask 195584
        %v1135 = vsel %vm1134, %v1133, %v1129
        %v1136 = vpack.c.bf16 %v1135, %v1135
        %v1137 = vld [vmem:[#allocation11] sm:$0xf]
        %v1138 = vld [vmem:[#allocation11 + $0x4] sm:$0xf]
        %v1139 = vld [vmem:[#allocation11 + $0x8] sm:$0xf]
        %v1140 = vld [vmem:[#allocation11 + $0xc] sm:$0xf]
        %v1141 = vld [vmem:[#allocation12] sm:$0x1]
        %v1143 = vlaneseq
        %v1144 = vshrl.u32 %v1143, 7
        %v1145 = vsub.s32 0, %v1144
        %v1146 = vrot.slane %v1141, %v1145
        %v1152 = vunpack.c.l.b16 %v1137
        %v1153 = vunpack.c.l.b16 %v1138
        %v1154 = vunpack.c.l.b16 %v1139
        %v1155 = vunpack.c.l.b16 %v1140
        %v1156 = vpack.c.b16 %v1153, %v1152
        %v1157 = vpack.c.b16 %v1155, %v1154
        %v1161 = vsel %vm567, %v1136, 0
        %1163 = vmatprep.subr.bf16.mxu0 0
        %1164 = vmatpush1.bf16.msra.mxu0 %v1156
        %1165 = vmatprep.subr.bf16.mxu0 0
        %1166 = vmatpush1.bf16.msra.mxu0 %v1157
        %1167 = vmatprep.subr.bf16.mxu0 0
        %1168 = vmatpush1.bf16.msra.mxu0 0
        %1169 = vmatprep.subr.bf16.mxu0 0
        %1170 = vmatpush1.bf16.msra.mxu0 0
        %1171 = vmatprep.subr.bf16.mxu0 0
        %1172 = vmatpush1.bf16.msra.mxu0 0
        %1173 = vmatprep.subr.bf16.mxu0 0
        %1174 = vmatpush1.bf16.msra.mxu0 0
        %1175 = vmatprep.subr.bf16.mxu0 0
        %1176 = vmatpush1.bf16.msra.mxu0 0
        %1177 = vmatprep.subr.bf16.mxu0 0
        %1178 = vmatpush1.bf16.msra.mxu0 0
        %1179 = vmatprep.subr.bf16.mxu0 0
        %1180 = vmatpush1.bf16.msra.mxu0 0
        %1181 = vmatprep.subr.bf16.mxu0 0
        %1182 = vmatpush1.bf16.msra.mxu0 0
        %1183 = vmatprep.subr.bf16.mxu0 0
        %1184 = vmatpush1.bf16.msra.mxu0 0
        %1185 = vmatprep.subr.bf16.mxu0 0
        %1186 = vmatpush1.bf16.msra.mxu0 0
        %1187 = vmatprep.subr.bf16.mxu0 0
        %1188 = vmatpush1.bf16.msra.mxu0 0
        %1189 = vmatprep.subr.bf16.mxu0 0
        %1190 = vmatpush1.bf16.msra.mxu0 0
        %1191 = vmatprep.subr.bf16.mxu0 0
        %1192 = vmatpush1.bf16.msra.mxu0 0
        %1193 = vmatprep.subr.bf16.mxu0 0
        %1194 = vmatpush1.bf16.msra.mxu0 0
        %1195 = vmatprep.mubr.bf16.mxu0 0
        %1196 = vmatmul.mubr.bf16.gmra.mrb[0].mxu0 %v1161
        %v1197 = vpop.f32.mrb[0].mxu0
        %v1198 = vadd.f32 %v1146, %v1197
        %v1199 = vpop.f32.mrb[0].mxu0
        %v1200 = vpop.f32.mrb[0].mxu0
        %v1201 = vpop.f32.mrb[0].mxu0
        %1202 = vdwg.mxu0
        %v1203 = vadd.f32 %v560, %v1198
        %s1204 = sld [smem:[#allocation20 + $0x2]]
        %s1205 = sld [smem:[#allocation20 + $0x3]]
        %v1206 = vsel %vm567, %v1203, 0.0
        %1207 = vadd.xlane.f32.xlu0 %v1206
        %v1208 = vpop.xlane.xlu0 %1207
        %v1209 = vmul.f32 %v1208, %v571
        %v1210 = vsub.f32 %v1203, %v1209
        %v1211 = vmul.f32 %v1210, %v1210
        %v1212 = vsel %vm567, %v1211, 0.0
        %1213 = vadd.xlane.f32.xlu0 %v1212
        %v1214 = vpop.xlane.xlu0 %1213
        %v1215 = vmul.f32 %v1214, %v578
        %v1216 = vrsqrt.pop %v1215
        %v1217 = vmul.f32 %v1215, %v1216
        %vm1218 = vcmp.eq.f32.partialorder %v1215, inf
        %v1219 = vsel %vm1218, %v1215, %v1217
        %vm1220 = vcmp.eq.f32.partialorder %v1215, 0.0
        %v1221 = vand.u32 %v1215, 2147483648
        %v1222 = vsel %vm1220, %v1221, %v1219
        %v1223 = vstv %s1204
        %v1224 = vmul.f32 %v1223, %v1210
        %v1225 = vadd.f32 %v1222, 1e-06
        %v1226 = vrcp.pop %v1225
        %v1227 = vmul.f32 %v1224, %v1226
        %v1228 = vstv %s1205
        %v1229 = vadd.f32 %v1227, %v1228
        %v1230 = vpack.c.bf16 %v1229, %v1229
        %v1231 = vld [vmem:[#allocation14] sm:$0xf]
        %v1232 = vld [vmem:[#allocation14 + $0x4] sm:$0xf]
        %v1233 = vld [vmem:[#allocation14 + $0x8] sm:$0xf]
        %v1234 = vld [vmem:[#allocation14 + $0xc] sm:$0xf]
        %v1235 = vld [vmem:[#allocation15] sm:$0x1]
        %v1237 = vlaneseq
        %v1238 = vshrl.u32 %v1237, 7
        %v1239 = vsub.s32 0, %v1238
        %v1240 = vrot.slane %v1235, %v1239
        %v1246 = vunpack.c.l.b16 %v1231
        %v1247 = vunpack.c.l.b16 %v1232
        %v1248 = vunpack.c.l.b16 %v1233
        %v1249 = vunpack.c.l.b16 %v1234
        %v1250 = vpack.c.b16 %v1247, %v1246
        %v1251 = vpack.c.b16 %v1249, %v1248
        %v1255 = vsel %vm567, %v1230, 0
        %1257 = vmatprep.subr.bf16.mxu0 0
        %1258 = vmatpush1.bf16.msra.mxu0 %v1250
        %1259 = vmatprep.subr.bf16.mxu0 0
        %1260 = vmatpush1.bf16.msra.mxu0 %v1251
        %1261 = vmatprep.subr.bf16.mxu0 0
        %1262 = vmatpush1.bf16.msra.mxu0 0
        %1263 = vmatprep.subr.bf16.mxu0 0
        %1264 = vmatpush1.bf16.msra.mxu0 0
        %1265 = vmatprep.subr.bf16.mxu0 0
        %1266 = vmatpush1.bf16.msra.mxu0 0
        %1267 = vmatprep.subr.bf16.mxu0 0
        %1268 = vmatpush1.bf16.msra.mxu0 0
        %1269 = vmatprep.subr.bf16.mxu0 0
        %1270 = vmatpush1.bf16.msra.mxu0 0
        %1271 = vmatprep.subr.bf16.mxu0 0
        %1272 = vmatpush1.bf16.msra.mxu0 0
        %1273 = vmatprep.subr.bf16.mxu0 0
        %1274 = vmatpush1.bf16.msra.mxu0 0
        %1275 = vmatprep.subr.bf16.mxu0 0
        %1276 = vmatpush1.bf16.msra.mxu0 0
        %1277 = vmatprep.subr.bf16.mxu0 0
        %1278 = vmatpush1.bf16.msra.mxu0 0
        %1279 = vmatprep.subr.bf16.mxu0 0
        %1280 = vmatpush1.bf16.msra.mxu0 0
        %1281 = vmatprep.subr.bf16.mxu0 0
        %1282 = vmatpush1.bf16.msra.mxu0 0
        %1283 = vmatprep.subr.bf16.mxu0 0
        %1284 = vmatpush1.bf16.msra.mxu0 0
        %1285 = vmatprep.subr.bf16.mxu0 0
        %1286 = vmatpush1.bf16.msra.mxu0 0
        %1287 = vmatprep.subr.bf16.mxu0 0
        %1288 = vmatpush1.bf16.msra.mxu0 0
        %1289 = vmatprep.mubr.bf16.mxu0 0
        %1290 = vmatmul.mubr.bf16.gmra.mrb[0].mxu0 %v1255
        %v1291 = vpop.f32.mrb[0].mxu0
        %v1292 = vadd.f32 %v1240, %v1291
        %v1293 = vpop.f32.mrb[0].mxu0
        %v1294 = vpop.f32.mrb[0].mxu0
        %v1295 = vpop.f32.mrb[0].mxu0
        %1296 = vdwg.mxu0
        %v1297 = vmax.f32 %v1292, 0.0
        %v1298 = vpack.c.bf16 %v1297, %v1297
        %v1299 = vld [vmem:[#allocation17] sm:$0xf]
        %v1300 = vld [vmem:[#allocation17 + $0x4] sm:$0xf]
        %v1301 = vld [vmem:[#allocation17 + $0x8] sm:$0xf]
        %v1302 = vld [vmem:[#allocation17 + $0xc] sm:$0xf]
        %v1303 = vld [vmem:[#allocation17 + $0x10] sm:$0xf]
        %v1304 = vld [vmem:[#allocation17 + $0x14] sm:$0xf]
        %v1305 = vld [vmem:[#allocation17 + $0x18] sm:$0xf]
        %v1306 = vld [vmem:[#allocation17 + $0x1c] sm:$0xf]
        %v1307 = vld [vmem:[#allocation18] sm:$0x1]
        %v1309 = vlaneseq
        %v1310 = vshrl.u32 %v1309, 7
        %v1311 = vsub.s32 0, %v1310
        %v1312 = vrot.slane %v1307, %v1311
        %v1322 = vunpack.c.l.b16 %v1299
        %v1323 = vunpack.c.l.b16 %v1300
        %v1324 = vunpack.c.l.b16 %v1301
        %v1325 = vunpack.c.l.b16 %v1302
        %v1326 = vunpack.c.l.b16 %v1303
        %v1327 = vunpack.c.l.b16 %v1304
        %v1328 = vunpack.c.l.b16 %v1305
        %v1329 = vunpack.c.l.b16 %v1306
        %v1330 = vpack.c.b16 %v1323, %v1322
        %v1331 = vpack.c.b16 %v1325, %v1324
        %v1332 = vpack.c.b16 %v1327, %v1326
        %v1333 = vpack.c.b16 %v1329, %v1328
        %vm1338 = vcmask 523264
        %v1340 = vsel %vm1338, %v1298, 0
        %1342 = vmatprep.subr.bf16.mxu0 0
        %1343 = vmatpush1.bf16.msra.mxu0 %v1330
        %1344 = vmatprep.subr.bf16.mxu0 0
        %1345 = vmatpush1.bf16.msra.mxu0 %v1331
        %1346 = vmatprep.subr.bf16.mxu0 0
        %1347 = vmatpush1.bf16.msra.mxu0 %v1332
        %1348 = vmatprep.subr.bf16.mxu0 0
        %1349 = vmatpush1.bf16.msra.mxu0 %v1333
        %1350 = vmatprep.subr.bf16.mxu0 0
        %1351 = vmatpush1.bf16.msra.mxu0 0
        %1352 = vmatprep.subr.bf16.mxu0 0
        %1353 = vmatpush1.bf16.msra.mxu0 0
        %1354 = vmatprep.subr.bf16.mxu0 0
        %1355 = vmatpush1.bf16.msra.mxu0 0
        %1356 = vmatprep.subr.bf16.mxu0 0
        %1357 = vmatpush1.bf16.msra.mxu0 0
        %1358 = vmatprep.subr.bf16.mxu0 0
        %1359 = vmatpush1.bf16.msra.mxu0 0
        %1360 = vmatprep.subr.bf16.mxu0 0
        %1361 = vmatpush1.bf16.msra.mxu0 0
        %1362 = vmatprep.subr.bf16.mxu0 0
        %1363 = vmatpush1.bf16.msra.mxu0 0
        %1364 = vmatprep.subr.bf16.mxu0 0
        %1365 = vmatpush1.bf16.msra.mxu0 0
        %1366 = vmatprep.subr.bf16.mxu0 0
        %1367 = vmatpush1.bf16.msra.mxu0 0
        %1368 = vmatprep.subr.bf16.mxu0 0
        %1369 = vmatpush1.bf16.msra.mxu0 0
        %1370 = vmatprep.subr.bf16.mxu0 0
        %1371 = vmatpush1.bf16.msra.mxu0 0
        %1372 = vmatprep.subr.bf16.mxu0 0
        %1373 = vmatpush1.bf16.msra.mxu0 0
        %1374 = vmatprep.mubr.bf16.mxu0 0
        %1375 = vmatmul.mubr.bf16.gmra.mrb[0].mxu0 %v1340
        %v1376 = vpop.f32.mrb[0].mxu0
        %v1377 = vadd.f32 %v1312, %v1376
        %v1378 = vpop.f32.mrb[0].mxu0
        %v1379 = vpop.f32.mrb[0].mxu0
        %v1380 = vpop.f32.mrb[0].mxu0
        %1381 = vdwg.mxu0
        %v1382 = vadd.f32 %v1203, %v1377
        %1383 = vst.msk [vmem:[%s558] sm:$0xff] %vm567, %v1382
        %s1384 = sand.u32 %s285, 1
        %s1385 = scalar_lea.sflag [#allocation4], %s1384
        %s1386 = sand.u32 %s285, 1
        %s1387 = smul.addr %s1386, 8
        %s1388 = scalar_lea.vmem [#allocation21], %s1387
        // Predicated region
        $region109: #{tpu_custom_call.1} parent=63 // pred_check
          %p1389 = pneg %p295
        $region110: #{tpu_custom_call.1} parent=63 // pred_check_branch
          %1391 = sbr.rel (%p1389) target = $region112
        $region111: #{tpu_custom_call.1} parent=63 // pred_region
          %s1393 = ssub.s32 128, 128
          %1394 = vsyncadd %s1385, %s1393
          %s1395 = smul.addr %s36, 128
          %s1396 = scalar_lea.hbm %s11, %s1395
          %s1398 = sshll.u32 %s1388, 4
          %s1399 = int_to_ptr.vmem [resolvable:$true] %s1398
          %1401 = dma.vmem_to_hbm [thread:$0]  %s1399, 128, %s1396, %s1385
        $region112: #{tpu_custom_call.1} parent=63 // pred_fallthru
          _
      $region64: #{tpu_custom_call.1} parent=5 // pred_fallthru
        _
      %p1402 = scmp.le.s32.totalorder 2, %s31
      // Predicated region
      $region113: #{tpu_custom_call.1} parent=5 // pred_check
        %p1403 = pneg %p1402
      $region114: #{tpu_custom_call.1} parent=5 // pred_check_branch
        %1405 = sbr.rel (%p1403) target = $region116
      $region115: #{tpu_custom_call.1} parent=5 // pred_region
        %s1406 = ssub.s32 %s31, 2
        // Predicated region
        $region117: #{tpu_custom_call.1} parent=115 // pred_check
          %p1407 = pneg %p301
        $region118: #{tpu_custom_call.1} parent=115 // pred_check_branch
          %1409 = sbr.rel (%p1407) target = $region120
        $region119: #{tpu_custom_call.1} parent=115 // pred_region
          %s1410 = sand.u32 %s286, 1
          %s1411 = scalar_lea.sflag [#allocation4], %s1410
          %s1412 = sand.u32 %s286, 1
          %s1413 = smul.addr %s1412, 8
          %s1414 = scalar_lea.vmem [#allocation21], %s1413
          %1415 = dma.done %s1411, 128
        $region120: #{tpu_custom_call.1} parent=115 // pred_fallthru
          _
      $region116: #{tpu_custom_call.1} parent=5 // pred_fallthru
        _
    $region6: #{tpu_custom_call.1} parent=1 // loop_footer
      %s35 = sadd.s32 1, %s31
    $region7: #{tpu_custom_call.1} parent=1 // loop_footer_branch
      %30 = sbr.rel target = $region3
    $region8: #{tpu_custom_call.1} parent=1 // loop_exit
      _
    %1416 = vsyncpa [#allocation3], 1
    %s1417 = scalar_lea.sflag [#allocation3], 1
    %1418 = vsyncpa %s1417, 1
    %1419 = vsyncpa [#allocation7], 1
    %s1420 = scalar_lea.sflag [#allocation7], 1
    %1421 = vsyncpa %s1420, 1
    %1422 = vsyncpa [#allocation10], 1
    %1423 = vsyncpa [#allocation13], 1
    %1424 = vsyncpa [#allocation16], 1
    %1425 = vsyncpa [#allocation19], 1
    %1426 = vsyncpa [#allocation4], 1
    %s1427 = scalar_lea.sflag [#allocation4], 1
    %1428 = vsyncpa %s1427, 1
    %1429 = vsyncpa [#allocation5], 1
    %s1430 = scalar_lea.sflag [#allocation5], 1
    %1431 = vsyncpa %s1430, 1

</llo_original>
